<compile_context>
chip_gen: v7x
topology: tpu7x:2x2x1
jax: 0.10.0
libtpu: 0.0.40
codegen_flags: <defaults>
</compile_context>

<pallas_src>
import jax
import jax.numpy as jnp
from jax import lax
from jax.experimental import pallas as pl
from jax.experimental.pallas import tpu as pltpu


def _upsample_convT_kernel(xm_ref, xt_ref, xb_ref, w_ref, b_ref, o_ref, col_ref):
    # xm_ref : (TH, W, C_in)      body rows of the input tile
    # xt_ref : (1, W, C_in)       row above the tile (edge-clamped; zeroed when h==0)
    # xb_ref : (1, W, C_in)       row below the tile (edge-clamped; zeroed when h==last)
    # w_ref  : (9*C_in, 4*C_out)  fused per-tap weights, phases along lanes
    # b_ref  : (1, 4*C_out)       f32 bias tiled per phase
    # o_ref  : (TH, W, 4*C_out)   all 4 sub-pixel phases fused on the lane axis
    # col_ref: (TH, W, 9*C_in)    VMEM im2col scratch
    TH, W, C = xm_ref.shape
    P = o_ref.shape[-1]
    cdt = col_ref.dtype

    h = pl.program_id(1)
    is_first = h == 0
    is_last = h == pl.num_programs(1) - 1

    # Build the im2col: tap (ro, co) of output pixel (m, j) reads input pixel
    # (m + ro - 1, j + co - 1); out-of-image taps are the pad=1 zero border.
    for ro in range(3):
        for co in range(3):
            k = ro * 3 + co
            lane = slice(k * C, (k + 1) * C)
            c0 = 1 if co == 0 else 0            # dest column range [c0, c1)
            c1 = W - 1 if co == 2 else W
            s0 = c0 + co - 1                    # source column range [s0, s1)
            s1 = c1 + co - 1

            # Zero the column border strip this tap never sees.
            if co == 0:
                col_ref[:, 0:1, lane] = jnp.zeros((TH, 1, C), cdt)
            elif co == 2:
                col_ref[:, W - 1:W, lane] = jnp.zeros((TH, 1, C), cdt)

            if c1 > c0:
                if ro == 1:
                    col_ref[:, c0:c1, lane] = xm_ref[:, s0:s1, :].astype(cdt)
                elif ro == 0:
                    if TH > 1:
                        col_ref[1:TH, c0:c1, lane] = (
                            xm_ref[0:TH - 1, s0:s1, :].astype(cdt))
                    top = xt_ref[:, s0:s1, :].astype(cdt)
                    col_ref[0:1, c0:c1, lane] = jnp.where(
                        is_first, jnp.zeros_like(top), top)
                else:  # ro == 2
                    if TH > 1:
                        col_ref[0:TH - 1, c0:c1, lane] = (
                            xm_ref[1:TH, s0:s1, :].astype(cdt))
                    bot = xb_ref[:, s0:s1, :].astype(cdt)
                    col_ref[TH - 1:TH, c0:c1, lane] = jnp.where(
                        is_last, jnp.zeros_like(bot), bot)

    # One long-K matmul: the f32 accumulation stays inside the MXU.
    col = col_ref[...].reshape(TH * W, 9 * C)
    res = jnp.dot(col, w_ref[...], preferred_element_type=jnp.float32)
    res = res + b_ref[...]                       # f32 bias / epilogue
    o_ref[...] = res.reshape(TH, W, P).astype(o_ref.dtype)


def _build_fused_weight(weight):
    """weight: (C_in, C_out, 4, 4) PyTorch ConvTranspose2d layout
    -> (9*C_in, 4*C_out): row block k = 3*ro + co holds tap (ro, co); column
    block p = 2*a + b holds the contribution to output phase
    (oh % 2, ow % 2) = (a, b), zero where that phase does not use the tap
    (16 of the 36 blocks are non-zero)."""
    C_in, C_out = weight.shape[0], weight.shape[1]
    w9 = jnp.zeros((3, 3, C_in, 4 * C_out), weight.dtype)
    for ro in range(3):
        for co in range(3):
            for a in range(2):
                di = ro - a
                if di not in (0, 1):
                    continue
                kh = 3 - a - 2 * di
                for b in range(2):
                    dj = co - b
                    if dj not in (0, 1):
                        continue
                    kw = 3 - b - 2 * dj
                    p = a * 2 + b
                    w9 = w9.at[ro, co, :, p * C_out:(p + 1) * C_out].set(
                        weight[:, :, kh, kw])
    return w9.reshape(9 * C_in, 4 * C_out)


def _vmem_capacity_bytes():
    cap = 64 * 1024 * 1024          # conservative fallback (v7x per-TC VMEM)
    try:
        cap = int(pltpu.get_tpu_info().vmem_capacity_bytes)
    except Exception:
        pass
    return max(32 * 1024 * 1024, min(cap, 128 * 1024 * 1024))


def _choose_tile_h(N, H, W, C_in, C_out, in_isz, cmp_isz,
                   vmem_budget_bytes, min_grid_steps=2):
    """Largest divisor-of-H tile whose working set (double-buffered input and
    output tiles, im2col scratch, f32 matmul result, resident fused weights)
    fits the per-TensorCore budget, preferring a grid with >= min_grid_steps
    steps so both v7x cores get work and the pipeline can overlap DMA."""
    P = 4 * C_out
    K = 9 * C_in
    w_bytes = 2 * K * P * cmp_isz + P * 4
    fits = []
    for th in range(1, H + 1):
        if H % th:
            continue
        in_b = 2 * (th + 2) * W * C_in * in_isz       # body + halo rows, dbl-buffered
        col_b = th * W * K * cmp_isz                  # im2col scratch
        out_b = 2 * th * W * P * in_isz               # dbl-buffered output
        res_b = th * W * P * 4                        # f32 matmul result / epilogue
        if in_b + col_b + out_b + res_b + w_bytes <= vmem_budget_bytes:
            fits.append(th)
    if not fits:
        return 1
    preferred = [th for th in fits if N * (H // th) >= min_grid_steps]
    return max(preferred) if preferred else max(fits)


def upsample_conv_transpose2d(x_nchw, weight, bias, *, compute_dtype=None):
    """ConvTranspose2d(C_in, C_out, kernel=(4,4), stride=(2,2), padding=(1,1)).

    x_nchw : (N, C_in, H, W)
    weight : (C_in, C_out, 4, 4)   (PyTorch ConvTranspose2d layout)
    bias   : (C_out,)
    compute_dtype : optional matmul-operand dtype (e.g. jnp.bfloat16 on
        v6e/v7x); accumulation/bias/epilogue stay f32.  Defaults to x.dtype.
    returns: (N, C_out, 2H, 2W)
    """
    N, C_in, H, W = x_nchw.shape
    C_out = weight.shape[1]
    out_dtype = x_nchw.dtype
    cdt = jnp.dtype(compute_dtype) if compute_dtype is not None else jnp.dtype(out_dtype)
    in_isz = jnp.dtype(out_dtype).itemsize
    cmp_isz = cdt.itemsize
    P = 4 * C_out

    # NHWC, unpadded: halo rows and the 1-pixel zero border are made in-kernel.
    x = jnp.transpose(x_nchw, (0, 2, 3, 1))

    vmem_cap = _vmem_capacity_bytes()
    TH = _choose_tile_h(N, H, W, C_in, C_out, in_isz, cmp_isz,
                        vmem_budget_bytes=int(0.6 * vmem_cap))
    nH = H // TH                 # TODO(synk): non-divisor H tiles (masked last tile)
    M = TH * W

    w2 = _build_fused_weight(weight).astype(cdt)           # (9*C_in, 4*C_out)
    b4 = jnp.tile(bias.astype(jnp.float32), 4)[None, :]    # (1, 4*C_out)

    flops = 2 * N * H * W * (9 * C_in) * P
    bytes_accessed = (N * nH * (TH + 2) * W * C_in * in_isz
                      + w2.size * cmp_isz + b4.size * 4
                      + N * H * W * P * in_isz)

    est_tile_bytes = (2 * (TH + 2) * W * C_in * in_isz + M * 9 * C_in * cmp_isz
                      + 2 * M * P * in_isz + M * P * 4
                      + 2 * w2.size * cmp_isz + P * 4)
    vmem_limit = int(min(0.85 * vmem_cap,
                         max(2 * est_tile_bytes, 32 * 1024 * 1024)))

    grid_spec = pltpu.PrefetchScalarGridSpec(
        num_scalar_prefetch=0,
        grid=(N, nH),                                   # both axes independent
        in_specs=[
            # tile body rows [h*TH, h*TH + TH)
            pl.BlockSpec((None, TH, W, C_in), lambda n, h: (n, h, 0, 0)),
            # single halo row above (edge-clamped; zeroed in-kernel when h==0)
            pl.BlockSpec((None, 1, W, C_in),
                         lambda n, h: (n, jnp.maximum(h * TH - 1, 0), 0, 0)),
            # single halo row below (edge-clamped; zeroed in-kernel when h==last)
            pl.BlockSpec((None, 1, W, C_in),
                         lambda n, h: (n, jnp.minimum(h * TH + TH, H - 1), 0, 0)),
            # resident fused weight + bias
            pl.BlockSpec((9 * C_in, P), lambda n, h: (0, 0)),
            pl.BlockSpec((1, P), lambda n, h: (0, 0)),
        ],
        out_specs=pl.BlockSpec((None, TH, W, P), lambda n, h: (n, h, 0, 0)),
        scratch_shapes=[pltpu.VMEM((TH, W, 9 * C_in), cdt)],
    )

    out_k = pl.pallas_call(
        _upsample_convT_kernel,
        out_shape=jax.ShapeDtypeStruct((N, H, W, P), out_dtype),
        grid_spec=grid_spec,
        compiler_params=pltpu.CompilerParams(
            dimension_semantics=("parallel", "parallel"),
            vmem_limit_bytes=vmem_limit),
        cost_estimate=pl.CostEstimate(flops=flops, transcendentals=0,
                                      bytes_accessed=bytes_accessed),
    )(x, x, x, w2, b4)

    # (N, H, W, 4*C_out) -> (N, H, W, 2, 2, C_out) -> NCHW (N, C_out, 2H, 2W).
    # In an NHWC model this phase de-interleave transpose (a full HBM round
    # trip of the 4x-sized output) would be dropped.
    o = out_k.reshape(N, H, W, 2, 2, C_out)
    o = jnp.transpose(o, (0, 5, 1, 3, 2, 4)).reshape(N, C_out, 2 * H, 2 * W)
    return o


def upsample_forward(x, t, weight, bias, *, compute_dtype=None):
    """Mirrors Upsample.forward(x, t): t is ignored."""
    del t
    return upsample_conv_transpose2d(x, weight, bias, compute_dtype=compute_dtype)


def _reference_conv_transpose(x_nchw, weight, bias):
    # transposed conv == dilated conv with flipped kernel and pad = k - 1 - p = 2
    w_flip = jnp.flip(weight, axis=(2, 3))               # (Cin, Cout, kh, kw)
    w_oihw = jnp.transpose(w_flip, (1, 0, 2, 3))         # (Cout, Cin, kh, kw)
    out = lax.conv_general_dilated(
        x_nchw, w_oihw,
        window_strides=(1, 1),
        padding=((2, 2), (2, 2)),
        lhs_dilation=(2, 2),
        dimension_numbers=("NCHW", "OIHW", "NCHW"),
    )
    return out + bias.reshape(1, -1, 1, 1)


if __name__ == "__main__":
    key = jax.random.PRNGKey(0)
    k_x, k_w, k_b, k_t = jax.random.split(key, 4)

    n_channels = 4
    N, H, W = 2, 16, 16

    x = jax.random.normal(k_x, (N, n_channels, H, W), dtype=jnp.float32)
    t = jax.random.normal(k_t, (N,), dtype=jnp.float32)   # unused, matches signature
    # ConvTranspose2d weight shape: (in_channels, out_channels, kH, kW)
    weight = 0.1 * jax.random.normal(k_w, (n_channels, n_channels, 4, 4),
                                     dtype=jnp.float32)
    bias = 0.1 * jax.random.normal(k_b, (n_channels,), dtype=jnp.float32)

    ref = jax.block_until_ready(_reference_conv_transpose(x, weight, bias))

    # f32 path.
    out = jax.block_until_ready(upsample_forward(x, t, weight, bias))
    assert out.shape == (N, n_channels, 2 * H, 2 * W), out.shape
    err = float(jnp.max(jnp.abs(out - ref)))
    assert jnp.allclose(out, ref, atol=1e-4, rtol=1e-4), err

    # bf16-operand path (what you'd use on v6e/v7x); f32 accumulation/epilogue.
    out_bf16 = jax.block_until_ready(
        upsample_forward(x, t, weight, bias, compute_dtype=jnp.bfloat16))
    err_bf16 = float(jnp.max(jnp.abs(out_bf16 - ref)))
    assert jnp.allclose(out_bf16, ref, atol=5e-2, rtol=5e-2), err_bf16

    print("KERNEL_OK")
</pallas_src>

<mosaic_0001>
module attributes {stable_mosaic.version = 11 : i64} {
  func.func @_upsample_convT_kernel(%arg0: i32, %arg1: i32, %arg2: memref<1x16x16x4xf32, #tpu.memory_space<vmem>>, %arg3: memref<1x1x16x4xf32, #tpu.memory_space<vmem>>, %arg4: memref<1x1x16x4xf32, #tpu.memory_space<vmem>>, %arg5: memref<36x16xf32, #tpu.memory_space<vmem>>, %arg6: memref<1x16xf32, #tpu.memory_space<vmem>>, %arg7: memref<1x16x16x16xf32, #tpu.memory_space<vmem>>, %arg8: memref<16x16x36xf32, #tpu.memory_space<vmem>>) attributes {dimension_semantics = [#tpu.dimension_semantics<parallel>, #tpu.dimension_semantics<parallel>], iteration_bounds = array<i64: 2, 1>, scalar_prefetch = 0 : i64, scratch_operands = 1 : i64, tpu.core_type = #tpu.core_type<tc>, window_params = [{transform_indices = @transform_0, window_bounds = array<i64: 1, 16, 16, 4>}, {transform_indices = @transform_1, window_bounds = array<i64: 1, 1, 16, 4>}, {transform_indices = @transform_2, window_bounds = array<i64: 1, 1, 16, 4>}, {pipeline_mode = #tpu.pipeline_mode<synchronous>, transform_indices = @transform_3, window_bounds = array<i64: 36, 16>}, {pipeline_mode = #tpu.pipeline_mode<synchronous>, transform_indices = @transform_4, window_bounds = array<i64: 1, 16>}, {transform_indices = @transform_5, window_bounds = array<i64: 1, 16, 16, 16>}]} {
    %c0_i32 = arith.constant 0 : i32
    %0 = arith.cmpi eq, %arg1, %c0_i32 : i32
    %c0_i32_0 = arith.constant 0 : i32
    %1 = arith.cmpi eq, %arg1, %c0_i32_0 : i32
    %cst = arith.constant 0.000000e+00 : f32
    %2 = vector.broadcast %cst : f32 to vector<16x1x4xf32>
    %c0 = arith.constant 0 : index
    %c0_1 = arith.constant 0 : index
    %c0_2 = arith.constant 0 : index
    %3 = vector.load %arg8[%c0, %c0_1, %c0_2] : memref<16x16x36xf32, #tpu.memory_space<vmem>>, vector<16x1x4xf32>
    tpu.vector_store %arg8[%c0, %c0_1, %c0_2], %2 {strides = array<i32>} : memref<16x16x36xf32, #tpu.memory_space<vmem>>, vector<16x1x4xf32>,
    %c0_3 = arith.constant 0 : index
    %c0_4 = arith.constant 0 : index
    %c0_5 = arith.constant 0 : index
    %c0_6 = arith.constant 0 : index
    %4 = vector.load %arg2[%c0_3, %c0_4, %c0_5, %c0_6] : memref<1x16x16x4xf32, #tpu.memory_space<vmem>>, vector<1x15x15x4xf32>
    %5 = vector.shape_cast %4 : vector<1x15x15x4xf32> to vector<15x15x4xf32>
    %c1 = arith.constant 1 : index
    %c1_7 = arith.constant 1 : index
    %c0_8 = arith.constant 0 : index
    %6 = vector.load %arg8[%c1, %c1_7, %c0_8] : memref<16x16x36xf32, #tpu.memory_space<vmem>>, vector<15x15x4xf32>
    tpu.vector_store %arg8[%c1, %c1_7, %c0_8], %5 {strides = array<i32>} : memref<16x16x36xf32, #tpu.memory_space<vmem>>, vector<15x15x4xf32>,
    %c0_9 = arith.constant 0 : index
    %c0_10 = arith.constant 0 : index
    %c0_11 = arith.constant 0 : index
    %c0_12 = arith.constant 0 : index
    %7 = vector.load %arg3[%c0_9, %c0_10, %c0_11, %c0_12] : memref<1x1x16x4xf32, #tpu.memory_space<vmem>>, vector<1x1x15x4xf32>
    %8 = vector.shape_cast %7 : vector<1x1x15x4xf32> to vector<1x15x4xf32>
    %cst_13 = arith.constant 0.000000e+00 : f32
    %9 = vector.broadcast %cst_13 : f32 to vector<1x15x4xf32>
    %10 = arith.select %0, %9, %8 : vector<1x15x4xf32>
    %c0_14 = arith.constant 0 : index
    %c1_15 = arith.constant 1 : index
    %c0_16 = arith.constant 0 : index
    %11 = vector.load %arg8[%c0_14, %c1_15, %c0_16] : memref<16x16x36xf32, #tpu.memory_space<vmem>>, vector<1x15x4xf32>
    tpu.vector_store %arg8[%c0_14, %c1_15, %c0_16], %10 {strides = array<i32>} : memref<16x16x36xf32, #tpu.memory_space<vmem>>, vector<1x15x4xf32>,
    %c0_17 = arith.constant 0 : index
    %c0_18 = arith.constant 0 : index
    %c0_19 = arith.constant 0 : index
    %c0_20 = arith.constant 0 : index
    %12 = vector.load %arg2[%c0_17, %c0_18, %c0_19, %c0_20] : memref<1x16x16x4xf32, #tpu.memory_space<vmem>>, vector<1x15x16x4xf32>
    %13 = vector.shape_cast %12 : vector<1x15x16x4xf32> to vector<15x16x4xf32>
    %c1_21 = arith.constant 1 : index
    %c0_22 = arith.constant 0 : index
    %c4 = arith.constant 4 : index
    %14 = vector.load %arg8[%c1_21, %c0_22, %c4] : memref<16x16x36xf32, #tpu.memory_space<vmem>>, vector<15x16x4xf32>
    tpu.vector_store %arg8[%c1_21, %c0_22, %c4], %13 {strides = array<i32>} : memref<16x16x36xf32, #tpu.memory_space<vmem>>, vector<15x16x4xf32>,
    %c0_23 = arith.constant 0 : index
    %c0_24 = arith.constant 0 : index
    %c0_25 = arith.constant 0 : index
    %c0_26 = arith.constant 0 : index
    %15 = vector.load %arg3[%c0_23, %c0_24, %c0_25, %c0_26] : memref<1x1x16x4xf32, #tpu.memory_space<vmem>>, vector<1x1x16x4xf32>
    %16 = vector.shape_cast %15 : vector<1x1x16x4xf32> to vector<1x16x4xf32>
    %cst_27 = arith.constant 0.000000e+00 : f32
    %17 = vector.broadcast %cst_27 : f32 to vector<1x16x4xf32>
    %18 = arith.select %0, %17, %16 : vector<1x16x4xf32>
    %c0_28 = arith.constant 0 : index
    %c0_29 = arith.constant 0 : index
    %c4_30 = arith.constant 4 : index
    %19 = vector.load %arg8[%c0_28, %c0_29, %c4_30] : memref<16x16x36xf32, #tpu.memory_space<vmem>>, vector<1x16x4xf32>
    tpu.vector_store %arg8[%c0_28, %c0_29, %c4_30], %18 {strides = array<i32>} : memref<16x16x36xf32, #tpu.memory_space<vmem>>, vector<1x16x4xf32>,
    %cst_31 = arith.constant 0.000000e+00 : f32
    %20 = vector.broadcast %cst_31 : f32 to vector<16x1x4xf32>
    %c0_32 = arith.constant 0 : index
    %c15 = arith.constant 15 : index
    %c8 = arith.constant 8 : index
    %21 = vector.load %arg8[%c0_32, %c15, %c8] : memref<16x16x36xf32, #tpu.memory_space<vmem>>, vector<16x1x4xf32>
    tpu.vector_store %arg8[%c0_32, %c15, %c8], %20 {strides = array<i32>} : memref<16x16x36xf32, #tpu.memory_space<vmem>>, vector<16x1x4xf32>,
    %c0_33 = arith.constant 0 : index
    %c0_34 = arith.constant 0 : index
    %c1_35 = arith.constant 1 : index
    %c0_36 = arith.constant 0 : index
    %22 = vector.load %arg2[%c0_33, %c0_34, %c1_35, %c0_36] : memref<1x16x16x4xf32, #tpu.memory_space<vmem>>, vector<1x15x15x4xf32>
    %23 = vector.shape_cast %22 : vector<1x15x15x4xf32> to vector<15x15x4xf32>
    %c1_37 = arith.constant 1 : index
    %c0_38 = arith.constant 0 : index
    %c8_39 = arith.constant 8 : index
    %24 = vector.load %arg8[%c1_37, %c0_38, %c8_39] : memref<16x16x36xf32, #tpu.memory_space<vmem>>, vector<15x15x4xf32>
    tpu.vector_store %arg8[%c1_37, %c0_38, %c8_39], %23 {strides = array<i32>} : memref<16x16x36xf32, #tpu.memory_space<vmem>>, vector<15x15x4xf32>,
    %c0_40 = arith.constant 0 : index
    %c0_41 = arith.constant 0 : index
    %c1_42 = arith.constant 1 : index
    %c0_43 = arith.constant 0 : index
    %25 = vector.load %arg3[%c0_40, %c0_41, %c1_42, %c0_43] : memref<1x1x16x4xf32, #tpu.memory_space<vmem>>, vector<1x1x15x4xf32>
    %26 = vector.shape_cast %25 : vector<1x1x15x4xf32> to vector<1x15x4xf32>
    %cst_44 = arith.constant 0.000000e+00 : f32
    %27 = vector.broadcast %cst_44 : f32 to vector<1x15x4xf32>
    %28 = arith.select %0, %27, %26 : vector<1x15x4xf32>
    %c0_45 = arith.constant 0 : index
    %c0_46 = arith.constant 0 : index
    %c8_47 = arith.constant 8 : index
    %29 = vector.load %arg8[%c0_45, %c0_46, %c8_47] : memref<16x16x36xf32, #tpu.memory_space<vmem>>, vector<1x15x4xf32>
    tpu.vector_store %arg8[%c0_45, %c0_46, %c8_47], %28 {strides = array<i32>} : memref<16x16x36xf32, #tpu.memory_space<vmem>>, vector<1x15x4xf32>,
    %cst_48 = arith.constant 0.000000e+00 : f32
    %30 = vector.broadcast %cst_48 : f32 to vector<16x1x4xf32>
    %c0_49 = arith.constant 0 : index
    %c0_50 = arith.constant 0 : index
    %c12 = arith.constant 12 : index
    %31 = vector.load %arg8[%c0_49, %c0_50, %c12] : memref<16x16x36xf32, #tpu.memory_space<vmem>>, vector<16x1x4xf32>
    tpu.vector_store %arg8[%c0_49, %c0_50, %c12], %30 {strides = array<i32>} : memref<16x16x36xf32, #tpu.memory_space<vmem>>, vector<16x1x4xf32>,
    %c0_51 = arith.constant 0 : index
    %c0_52 = arith.constant 0 : index
    %c0_53 = arith.constant 0 : index
    %c0_54 = arith.constant 0 : index
    %32 = vector.load %arg2[%c0_51, %c0_52, %c0_53, %c0_54] : memref<1x16x16x4xf32, #tpu.memory_space<vmem>>, vector<1x16x15x4xf32>
    %33 = vector.shape_cast %32 : vector<1x16x15x4xf32> to vector<16x15x4xf32>
    %c0_55 = arith.constant 0 : index
    %c1_56 = arith.constant 1 : index
    %c12_57 = arith.constant 12 : index
    %34 = vector.load %arg8[%c0_55, %c1_56, %c12_57] : memref<16x16x36xf32, #tpu.memory_space<vmem>>, vector<16x15x4xf32>
    tpu.vector_store %arg8[%c0_55, %c1_56, %c12_57], %33 {strides = array<i32>} : memref<16x16x36xf32, #tpu.memory_space<vmem>>, vector<16x15x4xf32>,
    %c0_58 = arith.constant 0 : index
    %c0_59 = arith.constant 0 : index
    %c0_60 = arith.constant 0 : index
    %c0_61 = arith.constant 0 : index
    %35 = vector.load %arg2[%c0_58, %c0_59, %c0_60, %c0_61] : memref<1x16x16x4xf32, #tpu.memory_space<vmem>>, vector<1x16x16x4xf32>
    %36 = vector.shape_cast %35 : vector<1x16x16x4xf32> to vector<16x16x4xf32>
    %c0_62 = arith.constant 0 : index
    %c0_63 = arith.constant 0 : index
    %c16 = arith.constant 16 : index
    %37 = vector.load %arg8[%c0_62, %c0_63, %c16] : memref<16x16x36xf32, #tpu.memory_space<vmem>>, vector<16x16x4xf32>
    tpu.vector_store %arg8[%c0_62, %c0_63, %c16], %36 {strides = array<i32>} : memref<16x16x36xf32, #tpu.memory_space<vmem>>, vector<16x16x4xf32>,
    %cst_64 = arith.constant 0.000000e+00 : f32
    %38 = vector.broadcast %cst_64 : f32 to vector<16x1x4xf32>
    %c0_65 = arith.constant 0 : index
    %c15_66 = arith.constant 15 : index
    %c20 = arith.constant 20 : index
    %39 = vector.load %arg8[%c0_65, %c15_66, %c20] : memref<16x16x36xf32, #tpu.memory_space<vmem>>, vector<16x1x4xf32>
    tpu.vector_store %arg8[%c0_65, %c15_66, %c20], %38 {strides = array<i32>} : memref<16x16x36xf32, #tpu.memory_space<vmem>>, vector<16x1x4xf32>,
    %c0_67 = arith.constant 0 : index
    %c0_68 = arith.constant 0 : index
    %c1_69 = arith.constant 1 : index
    %c0_70 = arith.constant 0 : index
    %40 = vector.load %arg2[%c0_67, %c0_68, %c1_69, %c0_70] : memref<1x16x16x4xf32, #tpu.memory_space<vmem>>, vector<1x16x15x4xf32>
    %41 = vector.shape_cast %40 : vector<1x16x15x4xf32> to vector<16x15x4xf32>
    %c0_71 = arith.constant 0 : index
    %c0_72 = arith.constant 0 : index
    %c20_73 = arith.constant 20 : index
    %42 = vector.load %arg8[%c0_71, %c0_72, %c20_73] : memref<16x16x36xf32, #tpu.memory_space<vmem>>, vector<16x15x4xf32>
    tpu.vector_store %arg8[%c0_71, %c0_72, %c20_73], %41 {strides = array<i32>} : memref<16x16x36xf32, #tpu.memory_space<vmem>>, vector<16x15x4xf32>,
    %cst_74 = arith.constant 0.000000e+00 : f32
    %43 = vector.broadcast %cst_74 : f32 to vector<16x1x4xf32>
    %c0_75 = arith.constant 0 : index
    %c0_76 = arith.constant 0 : index
    %c24 = arith.constant 24 : index
    %44 = vector.load %arg8[%c0_75, %c0_76, %c24] : memref<16x16x36xf32, #tpu.memory_space<vmem>>, vector<16x1x4xf32>
    tpu.vector_store %arg8[%c0_75, %c0_76, %c24], %43 {strides = array<i32>} : memref<16x16x36xf32, #tpu.memory_space<vmem>>, vector<16x1x4xf32>,
    %c0_77 = arith.constant 0 : index
    %c1_78 = arith.constant 1 : index
    %c0_79 = arith.constant 0 : index
    %c0_80 = arith.constant 0 : index
    %45 = vector.load %arg2[%c0_77, %c1_78, %c0_79, %c0_80] : memref<1x16x16x4xf32, #tpu.memory_space<vmem>>, vector<1x15x15x4xf32>
    %46 = vector.shape_cast %45 : vector<1x15x15x4xf32> to vector<15x15x4xf32>
    %c0_81 = arith.constant 0 : index
    %c1_82 = arith.constant 1 : index
    %c24_83 = arith.constant 24 : index
    %47 = vector.load %arg8[%c0_81, %c1_82, %c24_83] : memref<16x16x36xf32, #tpu.memory_space<vmem>>, vector<15x15x4xf32>
    tpu.vector_store %arg8[%c0_81, %c1_82, %c24_83], %46 {strides = array<i32>} : memref<16x16x36xf32, #tpu.memory_space<vmem>>, vector<15x15x4xf32>,
    %c0_84 = arith.constant 0 : index
    %c0_85 = arith.constant 0 : index
    %c0_86 = arith.constant 0 : index
    %c0_87 = arith.constant 0 : index
    %48 = vector.load %arg4[%c0_84, %c0_85, %c0_86, %c0_87] : memref<1x1x16x4xf32, #tpu.memory_space<vmem>>, vector<1x1x15x4xf32>
    %49 = vector.shape_cast %48 : vector<1x1x15x4xf32> to vector<1x15x4xf32>
    %cst_88 = arith.constant 0.000000e+00 : f32
    %50 = vector.broadcast %cst_88 : f32 to vector<1x15x4xf32>
    %51 = arith.select %1, %50, %49 : vector<1x15x4xf32>
    %c15_89 = arith.constant 15 : index
    %c1_90 = arith.constant 1 : index
    %c24_91 = arith.constant 24 : index
    %52 = vector.load %arg8[%c15_89, %c1_90, %c24_91] : memref<16x16x36xf32, #tpu.memory_space<vmem>>, vector<1x15x4xf32>
    tpu.vector_store %arg8[%c15_89, %c1_90, %c24_91], %51 {strides = array<i32>} : memref<16x16x36xf32, #tpu.memory_space<vmem>>, vector<1x15x4xf32>,
    %c0_92 = arith.constant 0 : index
    %c1_93 = arith.constant 1 : index
    %c0_94 = arith.constant 0 : index
    %c0_95 = arith.constant 0 : index
    %53 = vector.load %arg2[%c0_92, %c1_93, %c0_94, %c0_95] : memref<1x16x16x4xf32, #tpu.memory_space<vmem>>, vector<1x15x16x4xf32>
    %54 = vector.shape_cast %53 : vector<1x15x16x4xf32> to vector<15x16x4xf32>
    %c0_96 = arith.constant 0 : index
    %c0_97 = arith.constant 0 : index
    %c28 = arith.constant 28 : index
    %55 = vector.load %arg8[%c0_96, %c0_97, %c28] : memref<16x16x36xf32, #tpu.memory_space<vmem>>, vector<15x16x4xf32>
    tpu.vector_store %arg8[%c0_96, %c0_97, %c28], %54 {strides = array<i32>} : memref<16x16x36xf32, #tpu.memory_space<vmem>>, vector<15x16x4xf32>,
    %c0_98 = arith.constant 0 : index
    %c0_99 = arith.constant 0 : index
    %c0_100 = arith.constant 0 : index
    %c0_101 = arith.constant 0 : index
    %56 = vector.load %arg4[%c0_98, %c0_99, %c0_100, %c0_101] : memref<1x1x16x4xf32, #tpu.memory_space<vmem>>, vector<1x1x16x4xf32>
    %57 = vector.shape_cast %56 : vector<1x1x16x4xf32> to vector<1x16x4xf32>
    %cst_102 = arith.constant 0.000000e+00 : f32
    %58 = vector.broadcast %cst_102 : f32 to vector<1x16x4xf32>
    %59 = arith.select %1, %58, %57 : vector<1x16x4xf32>
    %c15_103 = arith.constant 15 : index
    %c0_104 = arith.constant 0 : index
    %c28_105 = arith.constant 28 : index
    %60 = vector.load %arg8[%c15_103, %c0_104, %c28_105] : memref<16x16x36xf32, #tpu.memory_space<vmem>>, vector<1x16x4xf32>
    tpu.vector_store %arg8[%c15_103, %c0_104, %c28_105], %59 {strides = array<i32>} : memref<16x16x36xf32, #tpu.memory_space<vmem>>, vector<1x16x4xf32>,
    %cst_106 = arith.constant 0.000000e+00 : f32
    %61 = vector.broadcast %cst_106 : f32 to vector<16x1x4xf32>
    %c0_107 = arith.constant 0 : index
    %c15_108 = arith.constant 15 : index
    %c32 = arith.constant 32 : index
    %62 = vector.load %arg8[%c0_107, %c15_108, %c32] : memref<16x16x36xf32, #tpu.memory_space<vmem>>, vector<16x1x4xf32>
    tpu.vector_store %arg8[%c0_107, %c15_108, %c32], %61 {strides = array<i32>} : memref<16x16x36xf32, #tpu.memory_space<vmem>>, vector<16x1x4xf32>,
    %c0_109 = arith.constant 0 : index
    %c1_110 = arith.constant 1 : index
    %c1_111 = arith.constant 1 : index
    %c0_112 = arith.constant 0 : index
    %63 = vector.load %arg2[%c0_109, %c1_110, %c1_111, %c0_112] : memref<1x16x16x4xf32, #tpu.memory_space<vmem>>, vector<1x15x15x4xf32>
    %64 = vector.shape_cast %63 : vector<1x15x15x4xf32> to vector<15x15x4xf32>
    %c0_113 = arith.constant 0 : index
    %c0_114 = arith.constant 0 : index
    %c32_115 = arith.constant 32 : index
    %65 = vector.load %arg8[%c0_113, %c0_114, %c32_115] : memref<16x16x36xf32, #tpu.memory_space<vmem>>, vector<15x15x4xf32>
    tpu.vector_store %arg8[%c0_113, %c0_114, %c32_115], %64 {strides = array<i32>} : memref<16x16x36xf32, #tpu.memory_space<vmem>>, vector<15x15x4xf32>,
    %c0_116 = arith.constant 0 : index
    %c0_117 = arith.constant 0 : index
    %c1_118 = arith.constant 1 : index
    %c0_119 = arith.constant 0 : index
    %66 = vector.load %arg4[%c0_116, %c0_117, %c1_118, %c0_119] : memref<1x1x16x4xf32, #tpu.memory_space<vmem>>, vector<1x1x15x4xf32>
    %67 = vector.shape_cast %66 : vector<1x1x15x4xf32> to vector<1x15x4xf32>
    %cst_120 = arith.constant 0.000000e+00 : f32
    %68 = vector.broadcast %cst_120 : f32 to vector<1x15x4xf32>
    %69 = arith.select %1, %68, %67 : vector<1x15x4xf32>
    %c15_121 = arith.constant 15 : index
    %c0_122 = arith.constant 0 : index
    %c32_123 = arith.constant 32 : index
    %70 = vector.load %arg8[%c15_121, %c0_122, %c32_123] : memref<16x16x36xf32, #tpu.memory_space<vmem>>, vector<1x15x4xf32>
    tpu.vector_store %arg8[%c15_121, %c0_122, %c32_123], %69 {strides = array<i32>} : memref<16x16x36xf32, #tpu.memory_space<vmem>>, vector<1x15x4xf32>,
    %c0_124 = arith.constant 0 : index
    %c0_125 = arith.constant 0 : index
    %c0_126 = arith.constant 0 : index
    %71 = vector.load %arg8[%c0_124, %c0_125, %c0_126] : memref<16x16x36xf32, #tpu.memory_space<vmem>>, vector<16x16x36xf32>
    %72 = vector.shape_cast %71 : vector<16x16x36xf32> to vector<256x36xf32>
    %c0_127 = arith.constant 0 : index
    %c0_128 = arith.constant 0 : index
    %73 = vector.load %arg5[%c0_127, %c0_128] : memref<36x16xf32, #tpu.memory_space<vmem>>, vector<36x16xf32>
    %cst_129 = arith.constant dense<0.000000e+00> : vector<256x16xf32>
    %74 = tpu.matmul %72, %73, %cst_129 {dimension_numbers = #tpu.dot_dimension_numbers<[1], [0], [0], [1], [0, 0, 1, 1], [], []>} : vector<256x36xf32>, vector<36x16xf32>, vector<256x16xf32> -> vector<256x16xf32>
    %c0_130 = arith.constant 0 : index
    %c0_131 = arith.constant 0 : index
    %75 = vector.load %arg6[%c0_130, %c0_131] : memref<1x16xf32, #tpu.memory_space<vmem>>, vector<1x16xf32>
    %76 = vector.broadcast %75 : vector<1x16xf32> to vector<256x16xf32>
    %77 = arith.addf %74, %76 : vector<256x16xf32>
    %78 = vector.shape_cast %77 : vector<256x16xf32> to vector<16x16x16xf32>
    %c0_132 = arith.constant 0 : index
    %c0_133 = arith.constant 0 : index
    %c0_134 = arith.constant 0 : index
    %c0_135 = arith.constant 0 : index
    %79 = vector.load %arg7[%c0_132, %c0_133, %c0_134, %c0_135] : memref<1x16x16x16xf32, #tpu.memory_space<vmem>>, vector<1x16x16x16xf32>
    %80 = vector.shape_cast %79 : vector<1x16x16x16xf32> to vector<16x16x16xf32>
    %81 = vector.shape_cast %78 : vector<16x16x16xf32> to vector<1x16x16x16xf32>
    tpu.vector_store %arg7[%c0_132, %c0_133, %c0_134, %c0_135], %81 {strides = array<i32>} : memref<1x16x16x16xf32, #tpu.memory_space<vmem>>, vector<1x16x16x16xf32>,
    return
  }
  func.func @transform_0(%arg0: i32, %arg1: i32) -> (i32, i32, i32, i32) {
    %c0_i32 = arith.constant 0 : i32
    %c0_i32_0 = arith.constant 0 : i32
    %c0_i32_1 = arith.constant 0 : i32
    return %arg0, %arg1, %c0_i32, %c0_i32_0 : i32, i32, i32, i32
  }
  func.func @transform_1(%arg0: i32, %arg1: i32) -> (i32, i32, i32, i32) {
    %c16_i32 = arith.constant 16 : i32
    %0 = arith.muli %arg1, %c16_i32 : i32
    %c1_i32 = arith.constant 1 : i32
    %1 = arith.subi %0, %c1_i32 : i32
    %c0_i32 = arith.constant 0 : i32
    %2 = arith.maxsi %1, %c0_i32 : i32
    %c0_i32_0 = arith.constant 0 : i32
    %c0_i32_1 = arith.constant 0 : i32
    %c0_i32_2 = arith.constant 0 : i32
    return %arg0, %2, %c0_i32_0, %c0_i32_1 : i32, i32, i32, i32
  }
  func.func @transform_2(%arg0: i32, %arg1: i32) -> (i32, i32, i32, i32) {
    %c16_i32 = arith.constant 16 : i32
    %0 = arith.muli %arg1, %c16_i32 : i32
    %c16_i32_0 = arith.constant 16 : i32
    %1 = arith.addi %0, %c16_i32_0 : i32
    %c15_i32 = arith.constant 15 : i32
    %2 = arith.minsi %1, %c15_i32 : i32
    %c0_i32 = arith.constant 0 : i32
    %c0_i32_1 = arith.constant 0 : i32
    %c0_i32_2 = arith.constant 0 : i32
    return %arg0, %2, %c0_i32, %c0_i32_1 : i32, i32, i32, i32
  }
  func.func @transform_3(%arg0: i32, %arg1: i32) -> (i32, i32) {
    %c0_i32 = arith.constant 0 : i32
    %c0_i32_0 = arith.constant 0 : i32
    %c0_i32_1 = arith.constant 0 : i32
    return %c0_i32, %c0_i32_0 : i32, i32
  }
  func.func @transform_4(%arg0: i32, %arg1: i32) -> (i32, i32) {
    %c0_i32 = arith.constant 0 : i32
    %c0_i32_0 = arith.constant 0 : i32
    %c0_i32_1 = arith.constant 0 : i32
    return %c0_i32, %c0_i32_0 : i32, i32
  }
  func.func @transform_5(%arg0: i32, %arg1: i32) -> (i32, i32, i32, i32) {
    %c0_i32 = arith.constant 0 : i32
    %c0_i32_0 = arith.constant 0 : i32
    %c0_i32_1 = arith.constant 0 : i32
    return %arg0, %arg1, %c0_i32, %c0_i32_0 : i32, i32, i32, i32
  }
}

</mosaic_0001>

<llo_original>
// kernel: tpu_custom_call.1
$region0: #{tpu_custom_call.1}
  #allocation0 [shape = 'u32[]', space=smem, size = 0x4, offset = 0x4, fixed_abs, tag = 'smem constant byte address 0x4 - core index']
  #allocation1 [shape = 'u32[144,128]{1,0:T(1,128)}', space=vmem, size = 0x12000, scoped, tag = 'internal scratch']
  #allocation2 [shape = 'f32[16,16,36]{2,1,0:T(8,128)}', space=vmem, size = 0x20000, scoped, tag = 'scratch operand']
  %s0 = inlined_call_operand.vmem [shape: f32[2,16,16,4], index: 0, kind: input, shape index: {}]
  %s1 = inlined_call_operand.vmem [shape: f32[2,16,16,4], index: 1, kind: input, shape index: {}]
  %s2 = inlined_call_operand.vmem [shape: f32[2,16,16,4], index: 2, kind: input, shape index: {}]
  %s3 = inlined_call_operand.vmem [shape: f32[36,16], index: 3, kind: input, shape index: {}]
  %s4 = inlined_call_operand.vmem [shape: f32[1,16], index: 4, kind: input, shape index: {}]
  %s5 = inlined_call_operand.hbm [shape: f32[2,16,16,16], index: 5, kind: output, shape index: {}]
  %s6 = sld [smem:[#allocation0]]
  $region53: #{tpu_custom_call.1} parent=0
    _
  %s8 = ssub.s32 1, %s6
  %s9 = scalar_select 0, %s8, %s6
  $region1: #{tpu_custom_call.1} parent=0
    #allocation3 [shape = 'u8[262144]{0}', space=vmem, size = 0x40000, scoped, tag = 'output window, operand 0']
    #allocation4 [shape = 's32[2]{0}', space=sflag, size = 0x8, scoped, tag = 'scoped memory for tpu_custom_call.1']
    %10 = vsyncpa [#allocation4], 0
    %s11 = scalar_lea.sflag [#allocation4], 1
    %12 = vsyncpa %s11, 0
    loop: start=0, step=1, limit=4
    $region2: #{tpu_custom_call.1} parent=1 // loop_pre_header
      _
    $region3: #{tpu_custom_call.1} parent=1 // loop_header
      %s14 = sphi 0, %s18
      %p15 = scmp.ge.s32.totalorder %s14, 4
      %s21 = sphi 0, %s33
      %s22 = sphi 0, %s29
      %s23 = sphi 0, %s21
      %s24 = sphi 0, %s22
      %s25 = sphi 0, %s23
      %s26 = sphi 0, %s24
      %s38 = sphi 0, %s40
      %s41 = sphi 0, %s38
      %s42 = sphi 0, %s41
      %s58 = sphi 0, %s42
      %s74 = sphi 0, %s76
      %s77 = sphi 0, %s74
      %s78 = sphi 0, %s77
      %s94 = sphi 0, %s78
      %s110 = sphi 0, %s112
      %s113 = sphi 0, %s110
      %s114 = sphi 0, %s113
      %s130 = sphi 0, %s114
      %s134 = sphi 0, %s134
      %s136 = sphi 0, %s134
      %s137 = sphi 0, %s136
      %s151 = sphi 0, %s137
      %s155 = sphi 0, %s155
      %s157 = sphi 0, %s155
      %s158 = sphi 0, %s157
      %s172 = sphi 0, %s158
      %s180 = sphi 0, %s182
      %s183 = sphi 0, %s180
      %s184 = sphi 0, %s183
      %s200 = sphi 0, %s184
    $region4: #{tpu_custom_call.1} parent=1 // loop_header_branch
      %17 = sbr.rel (%p15) target = $region8
    $region5: #{tpu_custom_call.1} parent=1 // loop_body
      %s19 = ssub.s32 %s14, 1
      %s20 = ssub.s32 %s14, 2
      %s27 = sadd.s32 1, %s22
      %p28 = scmp.ge.s32.totalorder %s27, 1
      %s29 = scalar_select %p28, 0, %s27
      %s30 = sadd.s32 1, %s21
      %s31 = scalar_select %p28, %s30, %s21
      %p32 = scmp.ge.s32.totalorder %s31, 2
      %s33 = scalar_select %p32, 0, %s31
      %s34 = ssub.s32 %s21, %s33
      %s35 = ssub.s32 %s22, %s29
      %s36 = sor.u32 %s34, %s35
      %p37 = scmp.eq.s32.totalorder %s36, 0
      %s39 = sadd.s32 %s38, 1
      %s40 = scalar_select %p37, %s38, %s39
      %p43 = pneg %p37
      %p44 = scmp.eq.s32.totalorder %s14, 1
      %p45 = por %p43, %p44
      %p46 = scmp.ne.s32.totalorder %s38, %s41
      %p47 = scmp.eq.s32.totalorder %s14, 0
      %p48 = por %p46, %p47
      %p49 = scmp.ne.s32.totalorder %s38, %s41
      %p50 = scmp.eq.s32.totalorder %s19, 1
      %p51 = por %p49, %p50
      %p52 = scmp.ne.s32.totalorder %s41, %s42
      %p53 = scmp.eq.s32.totalorder %s19, 0
      %p54 = por %p52, %p53
      %p55 = scmp.ne.s32.totalorder %s41, %s42
      %p56 = scmp.eq.s32.totalorder %s20, 1
      %p57 = por %p55, %p56
      %p59 = scmp.ne.s32.totalorder %s42, %s58
      %p60 = scmp.eq.s32.totalorder %s20, 0
      %p61 = por %p59, %p60
      %s62 = smul.u32 %s22, 16
      %s63 = ssub.s32 %s62, 1
      %p64 = scmp.gt.s32.totalorder %s63, 0
      %s65 = scalar_select %p64, %s63, 0
      %s66 = smul.u32 %s29, 16
      %s67 = ssub.s32 %s66, 1
      %p68 = scmp.gt.s32.totalorder %s67, 0
      %s69 = scalar_select %p68, %s67, 0
      %s70 = ssub.s32 %s21, %s33
      %s71 = ssub.s32 %s65, %s69
      %s72 = sor.u32 %s70, %s71
      %p73 = scmp.eq.s32.totalorder %s72, 0
      %s75 = sadd.s32 %s74, 1
      %s76 = scalar_select %p73, %s74, %s75
      %p79 = pneg %p73
      %p80 = scmp.eq.s32.totalorder %s14, 1
      %p81 = por %p79, %p80
      %p82 = scmp.ne.s32.totalorder %s74, %s77
      %p83 = scmp.eq.s32.totalorder %s14, 0
      %p84 = por %p82, %p83
      %p85 = scmp.ne.s32.totalorder %s74, %s77
      %p86 = scmp.eq.s32.totalorder %s19, 1
      %p87 = por %p85, %p86
      %p88 = scmp.ne.s32.totalorder %s77, %s78
      %p89 = scmp.eq.s32.totalorder %s19, 0
      %p90 = por %p88, %p89
      %p91 = scmp.ne.s32.totalorder %s77, %s78
      %p92 = scmp.eq.s32.totalorder %s20, 1
      %p93 = por %p91, %p92
      %p95 = scmp.ne.s32.totalorder %s78, %s94
      %p96 = scmp.eq.s32.totalorder %s20, 0
      %p97 = por %p95, %p96
      %s98 = smul.u32 %s22, 16
      %s99 = sadd.s32 %s98, 16
      %p100 = scmp.lt.s32.totalorder %s99, 15
      %s101 = scalar_select %p100, %s99, 15
      %s102 = smul.u32 %s29, 16
      %s103 = sadd.s32 %s102, 16
      %p104 = scmp.lt.s32.totalorder %s103, 15
      %s105 = scalar_select %p104, %s103, 15
      %s106 = ssub.s32 %s21, %s33
      %s107 = ssub.s32 %s101, %s105
      %s108 = sor.u32 %s106, %s107
      %p109 = scmp.eq.s32.totalorder %s108, 0
      %s111 = sadd.s32 %s110, 1
      %s112 = scalar_select %p109, %s110, %s111
      %p115 = pneg %p109
      %p116 = scmp.eq.s32.totalorder %s14, 1
      %p117 = por %p115, %p116
      %p118 = scmp.ne.s32.totalorder %s110, %s113
      %p119 = scmp.eq.s32.totalorder %s14, 0
      %p120 = por %p118, %p119
      %p121 = scmp.ne.s32.totalorder %s110, %s113
      %p122 = scmp.eq.s32.totalorder %s19, 1
      %p123 = por %p121, %p122
      %p124 = scmp.ne.s32.totalorder %s113, %s114
      %p125 = scmp.eq.s32.totalorder %s19, 0
      %p126 = por %p124, %p125
      %p127 = scmp.ne.s32.totalorder %s113, %s114
      %p128 = scmp.eq.s32.totalorder %s20, 1
      %p129 = por %p127, %p128
      %p131 = scmp.ne.s32.totalorder %s114, %s130
      %p132 = scmp.eq.s32.totalorder %s20, 0
      %p133 = por %p131, %p132
      %s135 = sadd.s32 %s134, 1
      %p138 = scmp.eq.s32.totalorder %s14, 1
      %p139 = scmp.ne.s32.totalorder %s134, %s136
      %p140 = scmp.eq.s32.totalorder %s14, 0
      %p141 = por %p139, %p140
      %p142 = scmp.ne.s32.totalorder %s134, %s136
      %p143 = scmp.eq.s32.totalorder %s19, 1
      %p144 = por %p142, %p143
      %p145 = scmp.ne.s32.totalorder %s136, %s137
      %p146 = scmp.eq.s32.totalorder %s19, 0
      %p147 = por %p145, %p146
      %p148 = scmp.ne.s32.totalorder %s136, %s137
      %p149 = scmp.eq.s32.totalorder %s20, 1
      %p150 = por %p148, %p149
      %p152 = scmp.ne.s32.totalorder %s137, %s151
      %p153 = scmp.eq.s32.totalorder %s20, 0
      %p154 = por %p152, %p153
      %s156 = sadd.s32 %s155, 1
      %p159 = scmp.eq.s32.totalorder %s14, 1
      %p160 = scmp.ne.s32.totalorder %s155, %s157
      %p161 = scmp.eq.s32.totalorder %s14, 0
      %p162 = por %p160, %p161
      %p163 = scmp.ne.s32.totalorder %s155, %s157
      %p164 = scmp.eq.s32.totalorder %s19, 1
      %p165 = por %p163, %p164
      %p166 = scmp.ne.s32.totalorder %s157, %s158
      %p167 = scmp.eq.s32.totalorder %s19, 0
      %p168 = por %p166, %p167
      %p169 = scmp.ne.s32.totalorder %s157, %s158
      %p170 = scmp.eq.s32.totalorder %s20, 1
      %p171 = por %p169, %p170
      %p173 = scmp.ne.s32.totalorder %s158, %s172
      %p174 = scmp.eq.s32.totalorder %s20, 0
      %p175 = por %p173, %p174
      %s176 = ssub.s32 %s21, %s33
      %s177 = ssub.s32 %s22, %s29
      %s178 = sor.u32 %s176, %s177
      %p179 = scmp.eq.s32.totalorder %s178, 0
      %s181 = sadd.s32 %s180, 1
      %s182 = scalar_select %p179, %s180, %s181
      %p185 = pneg %p179
      %p186 = scmp.eq.s32.totalorder %s14, 1
      %p187 = por %p185, %p186
      %p188 = scmp.ne.s32.totalorder %s180, %s183
      %p189 = scmp.eq.s32.totalorder %s14, 0
      %p190 = por %p188, %p189
      %p191 = scmp.ne.s32.totalorder %s180, %s183
      %p192 = scmp.eq.s32.totalorder %s19, 1
      %p193 = por %p191, %p192
      %p194 = scmp.ne.s32.totalorder %s183, %s184
      %p195 = scmp.eq.s32.totalorder %s19, 0
      %p196 = por %p194, %p195
      %p197 = scmp.ne.s32.totalorder %s183, %s184
      %p198 = scmp.eq.s32.totalorder %s20, 1
      %p199 = por %p197, %p198
      %p201 = scmp.ne.s32.totalorder %s184, %s200
      %p202 = scmp.eq.s32.totalorder %s20, 0
      %p203 = por %p201, %p202
      %p204 = scmp.le.s32.totalorder 1, %s14
      %p205 = scmp.lt.s32.totalorder %s14, 3
      %p206 = pnand %p204, %p205
      %p207 = pneg %p206
      // Predicated region
      $region9: #{tpu_custom_call.1} parent=5 // pred_check
        _
      $region10: #{tpu_custom_call.1} parent=5 // pred_check_branch
        %209 = sbr.rel (%p206) target = $region12
      $region11: #{tpu_custom_call.1} parent=5 // pred_region
        %s210 = ssub.s32 %s14, 1
        // Predicated region
        $region13: #{tpu_custom_call.1} parent=11 // pred_check
          %p211 = pneg %p147
        $region14: #{tpu_custom_call.1} parent=11 // pred_check_branch
          %213 = sbr.rel (%p211) target = $region16
        $region15: #{tpu_custom_call.1} parent=11 // pred_region
          _
        $region16: #{tpu_custom_call.1} parent=11 // pred_fallthru
          _
        // Predicated region
        $region17: #{tpu_custom_call.1} parent=11 // pred_check
          %p214 = pneg %p168
        $region18: #{tpu_custom_call.1} parent=11 // pred_check_branch
          %216 = sbr.rel (%p214) target = $region20
        $region19: #{tpu_custom_call.1} parent=11 // pred_region
          _
        $region20: #{tpu_custom_call.1} parent=11 // pred_fallthru
          _
      $region12: #{tpu_custom_call.1} parent=5 // pred_fallthru
        _
      %p217 = scmp.lt.s32.totalorder %s14, 2
      // Predicated region
      $region21: #{tpu_custom_call.1} parent=5 // pred_check
        %p218 = pneg %p217
      $region22: #{tpu_custom_call.1} parent=5 // pred_check_branch
        %220 = sbr.rel (%p218) target = $region24
      $region23: #{tpu_custom_call.1} parent=5 // pred_region
        // Predicated region
        $region25: #{tpu_custom_call.1} parent=23 // pred_check
          %p221 = pneg %p48
        $region26: #{tpu_custom_call.1} parent=23 // pred_check_branch
          %223 = sbr.rel (%p221) target = $region28
        $region27: #{tpu_custom_call.1} parent=23 // pred_region
          %s224 = smul.u32 16, %s22
          %p225 = scmp.lt.s32.totalorder %s21, 1
          %s226 = scalar_select %p225, %s21, 1
          %p227 = scmp.lt.s32.totalorder %s224, 15
          %s228 = scalar_select %p227, %s224, 15
          %s229 = smul.addr %s228, 2
          %s230 = smul.addr %s226, 32
          %s231 = sadd.s32 %s229, %s230
          %s232 = smul.addr %s231, 8
          %s233 = scalar_lea.vmem %s0, %s232
          %s234 = smul.u32 16, %s22
        $region28: #{tpu_custom_call.1} parent=23 // pred_fallthru
          _
        // Predicated region
        $region29: #{tpu_custom_call.1} parent=23 // pred_check
          %p235 = pneg %p84
        $region30: #{tpu_custom_call.1} parent=23 // pred_check_branch
          %237 = sbr.rel (%p235) target = $region32
        $region31: #{tpu_custom_call.1} parent=23 // pred_region
          %s238 = smul.u32 %s22, 16
          %s239 = ssub.s32 %s238, 1
          %p240 = scmp.gt.s32.totalorder %s239, 0
          %s241 = scalar_select %p240, %s239, 0
          %p242 = scmp.lt.s32.totalorder %s21, 1
          %s243 = scalar_select %p242, %s21, 1
          %p244 = scmp.lt.s32.totalorder %s241, 15
          %s245 = scalar_select %p244, %s241, 15
          %s246 = smul.addr %s245, 2
          %s247 = smul.addr %s243, 32
          %s248 = sadd.s32 %s246, %s247
          %s249 = smul.addr %s248, 8
          %s250 = scalar_lea.vmem %s1, %s249
          %s251 = smul.u32 %s22, 16
          %s252 = ssub.s32 %s251, 1
          %p253 = scmp.gt.s32.totalorder %s252, 0
          %s254 = scalar_select %p253, %s252, 0
        $region32: #{tpu_custom_call.1} parent=23 // pred_fallthru
          _
        // Predicated region
        $region33: #{tpu_custom_call.1} parent=23 // pred_check
          %p255 = pneg %p120
        $region34: #{tpu_custom_call.1} parent=23 // pred_check_branch
          %257 = sbr.rel (%p255) target = $region36
        $region35: #{tpu_custom_call.1} parent=23 // pred_region
          %s258 = smul.u32 %s22, 16
          %s259 = sadd.s32 %s258, 16
          %p260 = scmp.lt.s32.totalorder %s259, 15
          %s261 = scalar_select %p260, %s259, 15
          %p262 = scmp.lt.s32.totalorder %s21, 1
          %s263 = scalar_select %p262, %s21, 1
          %p264 = scmp.lt.s32.totalorder %s261, 15
          %s265 = scalar_select %p264, %s261, 15
          %s266 = smul.addr %s265, 2
          %s267 = smul.addr %s263, 32
          %s268 = sadd.s32 %s266, %s267
          %s269 = smul.addr %s268, 8
          %s270 = scalar_lea.vmem %s2, %s269
          %s271 = smul.u32 %s22, 16
          %s272 = sadd.s32 %s271, 16
          %p273 = scmp.lt.s32.totalorder %s272, 15
          %s274 = scalar_select %p273, %s272, 15
        $region36: #{tpu_custom_call.1} parent=23 // pred_fallthru
          _
      $region24: #{tpu_custom_call.1} parent=5 // pred_fallthru
        _
      %p275 = scmp.le.s32.totalorder 1, %s14
      %p276 = scmp.lt.s32.totalorder %s14, 3
      %p277 = pnand %p275, %p276
      %p278 = pneg %p277
      // Predicated region
      $region37: #{tpu_custom_call.1} parent=5 // pred_check
        _
      $region38: #{tpu_custom_call.1} parent=5 // pred_check_branch
        %280 = sbr.rel (%p277) target = $region40
      $region39: #{tpu_custom_call.1} parent=5 // pred_region
        %s281 = ssub.s32 %s14, 1
        %s282 = smul.u32 16, %s24
        %p283 = scmp.lt.s32.totalorder %s23, 1
        %s284 = scalar_select %p283, %s23, 1
        %p285 = scmp.lt.s32.totalorder %s282, 15
        %s286 = scalar_select %p285, %s282, 15
        %s287 = smul.addr %s286, 2
        %s288 = smul.addr %s284, 32
        %s289 = sadd.s32 %s287, %s288
        %s290 = smul.addr %s289, 8
        %s291 = scalar_lea.vmem %s0, %s290
        %p292 = pneg %p54
        %p293 = pneg %p51
        %s294 = smul.u32 %s24, 16
        %s295 = ssub.s32 %s294, 1
        %p296 = scmp.gt.s32.totalorder %s295, 0
        %s297 = scalar_select %p296, %s295, 0
        %p298 = scmp.lt.s32.totalorder %s23, 1
        %s299 = scalar_select %p298, %s23, 1
        %p300 = scmp.lt.s32.totalorder %s297, 15
        %s301 = scalar_select %p300, %s297, 15
        %s302 = smul.addr %s301, 2
        %s303 = smul.addr %s299, 32
        %s304 = sadd.s32 %s302, %s303
        %s305 = smul.addr %s304, 8
        %s306 = scalar_lea.vmem %s1, %s305
        %p307 = pneg %p90
        %p308 = pneg %p87
        %s309 = smul.u32 %s24, 16
        %s310 = sadd.s32 %s309, 16
        %p311 = scmp.lt.s32.totalorder %s310, 15
        %s312 = scalar_select %p311, %s310, 15
        %p313 = scmp.lt.s32.totalorder %s23, 1
        %s314 = scalar_select %p313, %s23, 1
        %p315 = scmp.lt.s32.totalorder %s312, 15
        %s316 = scalar_select %p315, %s312, 15
        %s317 = smul.addr %s316, 2
        %s318 = smul.addr %s314, 32
        %s319 = sadd.s32 %s317, %s318
        %s320 = smul.addr %s319, 8
        %s321 = scalar_lea.vmem %s2, %s320
        %p322 = pneg %p126
        %p323 = pneg %p123
        %p324 = pneg %p147
        %p325 = pneg %p144
        %p326 = pneg %p168
        %p327 = pneg %p165
        %p328 = pneg %p196
        %p329 = pneg %p193
        %s330 = sand.u32 %s183, 1
        %s331 = scalar_lea.sflag [#allocation4], %s330
        %s332 = sand.u32 %s183, 1
        %s333 = smul.addr %s332, 256
        %s334 = scalar_lea.vmem [#allocation3], %s333
        %s335 = smul.u32 16, %s24
        %p336 = scmp.lt.s32.totalorder %s23, 1
        %s337 = scalar_select %p336, %s23, 1
        %p338 = scmp.lt.s32.totalorder %s335, 15
        %s339 = scalar_select %p338, %s335, 15
        %s340 = smul.addr %s339, 2
        %s341 = smul.addr %s337, 32
        %s342 = sadd.s32 %s340, %s341
        %s343 = smul.addr %s342, 8
        %s344 = scalar_lea.vmem %s0, %s343
        %s345 = smul.u32 16, %s24
        %s346 = smul.u32 %s24, 16
        %s347 = ssub.s32 %s346, 1
        %p348 = scmp.gt.s32.totalorder %s347, 0
        %s349 = scalar_select %p348, %s347, 0
        %p350 = scmp.lt.s32.totalorder %s23, 1
        %s351 = scalar_select %p350, %s23, 1
        %p352 = scmp.lt.s32.totalorder %s349, 15
        %s353 = scalar_select %p352, %s349, 15
        %s354 = smul.addr %s353, 2
        %s355 = smul.addr %s351, 32
        %s356 = sadd.s32 %s354, %s355
        %s357 = smul.addr %s356, 8
        %s358 = scalar_lea.vmem %s1, %s357
        %s359 = smul.u32 %s24, 16
        %s360 = ssub.s32 %s359, 1
        %p361 = scmp.gt.s32.totalorder %s360, 0
        %s362 = scalar_select %p361, %s360, 0
        %s363 = smul.u32 %s24, 16
        %s364 = sadd.s32 %s363, 16
        %p365 = scmp.lt.s32.totalorder %s364, 15
        %s366 = scalar_select %p365, %s364, 15
        %p367 = scmp.lt.s32.totalorder %s23, 1
        %s368 = scalar_select %p367, %s23, 1
        %p369 = scmp.lt.s32.totalorder %s366, 15
        %s370 = scalar_select %p369, %s366, 15
        %s371 = smul.addr %s370, 2
        %s372 = smul.addr %s368, 32
        %s373 = sadd.s32 %s371, %s372
        %s374 = smul.addr %s373, 8
        %s375 = scalar_lea.vmem %s2, %s374
        %s376 = smul.u32 %s24, 16
        %s377 = sadd.s32 %s376, 16
        %p378 = scmp.lt.s32.totalorder %s377, 15
        %s379 = scalar_select %p378, %s377, 15
        %s380 = smul.u32 16, %s24
        %p381 = scmp.eq.s32.totalorder %s24, 0
        %vm382 = vcmask 24576
        %383 = vst.msk [vmem:[#allocation2] sm:$0x1] %vm382, 0.0
        %384 = vst.msk [vmem:[#allocation2 + $0x10] sm:$0x1] %vm382, 0.0
        %385 = vst.msk [vmem:[#allocation2 + $0x20] sm:$0x1] %vm382, 0.0
        %386 = vst.msk [vmem:[#allocation2 + $0x30] sm:$0x1] %vm382, 0.0
        %387 = vst.msk [vmem:[#allocation2 + $0x40] sm:$0x1] %vm382, 0.0
        %388 = vst.msk [vmem:[#allocation2 + $0x50] sm:$0x1] %vm382, 0.0
        %389 = vst.msk [vmem:[#allocation2 + $0x60] sm:$0x1] %vm382, 0.0
        %390 = vst.msk [vmem:[#allocation2 + $0x70] sm:$0x1] %vm382, 0.0
        %391 = vst.msk [vmem:[#allocation2 + $0x80] sm:$0x1] %vm382, 0.0
        %392 = vst.msk [vmem:[#allocation2 + $0x90] sm:$0x1] %vm382, 0.0
        %393 = vst.msk [vmem:[#allocation2 + $0xa0] sm:$0x1] %vm382, 0.0
        %394 = vst.msk [vmem:[#allocation2 + $0xb0] sm:$0x1] %vm382, 0.0
        %395 = vst.msk [vmem:[#allocation2 + $0xc0] sm:$0x1] %vm382, 0.0
        %396 = vst.msk [vmem:[#allocation2 + $0xd0] sm:$0x1] %vm382, 0.0
        %397 = vst.msk [vmem:[#allocation2 + $0xe0] sm:$0x1] %vm382, 0.0
        %398 = vst.msk [vmem:[#allocation2 + $0xf0] sm:$0x1] %vm382, 0.0
        %v399 = vld [vmem:[%s344] sm:$0xff]
        %v400 = vld [vmem:[%s344 + $0x8] sm:$0x7f]
        %v401 = vld [vmem:[%s344 + $0x10] sm:$0xff]
        %v402 = vld [vmem:[%s344 + $0x18] sm:$0x7f]
        %v403 = vld [vmem:[%s344 + $0x20] sm:$0xff]
        %v404 = vld [vmem:[%s344 + $0x28] sm:$0x7f]
        %v405 = vld [vmem:[%s344 + $0x30] sm:$0xff]
        %v406 = vld [vmem:[%s344 + $0x38] sm:$0x7f]
        %v407 = vld [vmem:[%s344 + $0x40] sm:$0xff]
        %v408 = vld [vmem:[%s344 + $0x48] sm:$0x7f]
        %v409 = vld [vmem:[%s344 + $0x50] sm:$0xff]
        %v410 = vld [vmem:[%s344 + $0x58] sm:$0x7f]
        %v411 = vld [vmem:[%s344 + $0x60] sm:$0xff]
        %v412 = vld [vmem:[%s344 + $0x68] sm:$0x7f]
        %v413 = vld [vmem:[%s344 + $0x70] sm:$0xff]
        %v414 = vld [vmem:[%s344 + $0x78] sm:$0x7f]
        %v415 = vld [vmem:[%s344 + $0x80] sm:$0xff]
        %v416 = vld [vmem:[%s344 + $0x88] sm:$0x7f]
        %v417 = vld [vmem:[%s344 + $0x90] sm:$0xff]
        %v418 = vld [vmem:[%s344 + $0x98] sm:$0x7f]
        %v419 = vld [vmem:[%s344 + $0xa0] sm:$0xff]
        %v420 = vld [vmem:[%s344 + $0xa8] sm:$0x7f]
        %v421 = vld [vmem:[%s344 + $0xb0] sm:$0xff]
        %v422 = vld [vmem:[%s344 + $0xb8] sm:$0x7f]
        %v423 = vld [vmem:[%s344 + $0xc0] sm:$0xff]
        %v424 = vld [vmem:[%s344 + $0xc8] sm:$0x7f]
        %v425 = vld [vmem:[%s344 + $0xd0] sm:$0xff]
        %v426 = vld [vmem:[%s344 + $0xd8] sm:$0x7f]
        %v427 = vld [vmem:[%s344 + $0xe0] sm:$0xff]
        %v428 = vld [vmem:[%s344 + $0xe8] sm:$0x7f]
        %s429 = scalar_lea.vmem [#allocation2], 16
        %vm430 = vcmask 31744
        %431 = vst.msk [vmem:[%s429 + $0x1] sm:$0xff] %vm430, %v399
        %vm432 = vcmask 30720
        %433 = vst.msk [vmem:[%s429 + $0x9] sm:$0x7f] %vm432, %v400
        %434 = vst.msk [vmem:[%s429 + $0x11] sm:$0xff] %vm430, %v401
        %435 = vst.msk [vmem:[%s429 + $0x19] sm:$0x7f] %vm432, %v402
        %436 = vst.msk [vmem:[%s429 + $0x21] sm:$0xff] %vm430, %v403
        %437 = vst.msk [vmem:[%s429 + $0x29] sm:$0x7f] %vm432, %v404
        %438 = vst.msk [vmem:[%s429 + $0x31] sm:$0xff] %vm430, %v405
        %439 = vst.msk [vmem:[%s429 + $0x39] sm:$0x7f] %vm432, %v406
        %440 = vst.msk [vmem:[%s429 + $0x41] sm:$0xff] %vm430, %v407
        %441 = vst.msk [vmem:[%s429 + $0x49] sm:$0x7f] %vm432, %v408
        %442 = vst.msk [vmem:[%s429 + $0x51] sm:$0xff] %vm430, %v409
        %443 = vst.msk [vmem:[%s429 + $0x59] sm:$0x7f] %vm432, %v410
        %444 = vst.msk [vmem:[%s429 + $0x61] sm:$0xff] %vm430, %v411
        %445 = vst.msk [vmem:[%s429 + $0x69] sm:$0x7f] %vm432, %v412
        %446 = vst.msk [vmem:[%s429 + $0x71] sm:$0xff] %vm430, %v413
        %447 = vst.msk [vmem:[%s429 + $0x79] sm:$0x7f] %vm432, %v414
        %448 = vst.msk [vmem:[%s429 + $0x81] sm:$0xff] %vm430, %v415
        %449 = vst.msk [vmem:[%s429 + $0x89] sm:$0x7f] %vm432, %v416
        %450 = vst.msk [vmem:[%s429 + $0x91] sm:$0xff] %vm430, %v417
        %451 = vst.msk [vmem:[%s429 + $0x99] sm:$0x7f] %vm432, %v418
        %452 = vst.msk [vmem:[%s429 + $0xa1] sm:$0xff] %vm430, %v419
        %453 = vst.msk [vmem:[%s429 + $0xa9] sm:$0x7f] %vm432, %v420
        %454 = vst.msk [vmem:[%s429 + $0xb1] sm:$0xff] %vm430, %v421
        %455 = vst.msk [vmem:[%s429 + $0xb9] sm:$0x7f] %vm432, %v422
        %456 = vst.msk [vmem:[%s429 + $0xc1] sm:$0xff] %vm430, %v423
        %457 = vst.msk [vmem:[%s429 + $0xc9] sm:$0x7f] %vm432, %v424
        %458 = vst.msk [vmem:[%s429 + $0xd1] sm:$0xff] %vm430, %v425
        %459 = vst.msk [vmem:[%s429 + $0xd9] sm:$0x7f] %vm432, %v426
        %460 = vst.msk [vmem:[%s429 + $0xe1] sm:$0xff] %vm430, %v427
        %461 = vst.msk [vmem:[%s429 + $0xe9] sm:$0x7f] %vm432, %v428
        %v462 = vld [vmem:[%s358] sm:$0xff]
        %v463 = vld [vmem:[%s358 + $0x8] sm:$0x7f]
        %s464 = scalar_select %p381, 1, 0
        %v465 = vstv %s464
        %vm466 = vcmp.eq.s32.totalorder %v465, 1
        %v467 = vsel %vm466, 0.0, %v462
        %v468 = vsel %vm466, 0.0, %v463
        %469 = vst.msk [vmem:[#allocation2 + $0x1] sm:$0xff] %vm430, %v467
        %470 = vst.msk [vmem:[#allocation2 + $0x9] sm:$0x7f] %vm432, %v468
        %v471 = vld [vmem:[%s344] sm:$0xff]
        %v472 = vld [vmem:[%s344 + $0x8] sm:$0xff]
        %v473 = vld [vmem:[%s344 + $0x10] sm:$0xff]
        %v474 = vld [vmem:[%s344 + $0x18] sm:$0xff]
        %v475 = vld [vmem:[%s344 + $0x20] sm:$0xff]
        %v476 = vld [vmem:[%s344 + $0x28] sm:$0xff]
        %v477 = vld [vmem:[%s344 + $0x30] sm:$0xff]
        %v478 = vld [vmem:[%s344 + $0x38] sm:$0xff]
        %v479 = vld [vmem:[%s344 + $0x40] sm:$0xff]
        %v480 = vld [vmem:[%s344 + $0x48] sm:$0xff]
        %v481 = vld [vmem:[%s344 + $0x50] sm:$0xff]
        %v482 = vld [vmem:[%s344 + $0x58] sm:$0xff]
        %v483 = vld [vmem:[%s344 + $0x60] sm:$0xff]
        %v484 = vld [vmem:[%s344 + $0x68] sm:$0xff]
        %v485 = vld [vmem:[%s344 + $0x70] sm:$0xff]
        %v486 = vld [vmem:[%s344 + $0x78] sm:$0xff]
        %v487 = vld [vmem:[%s344 + $0x80] sm:$0xff]
        %v488 = vld [vmem:[%s344 + $0x88] sm:$0xff]
        %v489 = vld [vmem:[%s344 + $0x90] sm:$0xff]
        %v490 = vld [vmem:[%s344 + $0x98] sm:$0xff]
        %v491 = vld [vmem:[%s344 + $0xa0] sm:$0xff]
        %v492 = vld [vmem:[%s344 + $0xa8] sm:$0xff]
        %v493 = vld [vmem:[%s344 + $0xb0] sm:$0xff]
        %v494 = vld [vmem:[%s344 + $0xb8] sm:$0xff]
        %v495 = vld [vmem:[%s344 + $0xc0] sm:$0xff]
        %v496 = vld [vmem:[%s344 + $0xc8] sm:$0xff]
        %v497 = vld [vmem:[%s344 + $0xd0] sm:$0xff]
        %v498 = vld [vmem:[%s344 + $0xd8] sm:$0xff]
        %v499 = vld [vmem:[%s344 + $0xe0] sm:$0xff]
        %v500 = vld [vmem:[%s344 + $0xe8] sm:$0xff]
        %531 = vrot.lane.b32.xlu0 %v471, 4
        %v532 = vpop.permute.xlu0 %531
        %533 = vrot.lane.b32.xlu0 %v472, 4
        %v534 = vpop.permute.xlu0 %533
        %535 = vrot.lane.b32.xlu0 %v473, 4
        %v536 = vpop.permute.xlu0 %535
        %537 = vrot.lane.b32.xlu0 %v474, 4
        %v538 = vpop.permute.xlu0 %537
        %539 = vrot.lane.b32.xlu0 %v475, 4
        %v540 = vpop.permute.xlu0 %539
        %541 = vrot.lane.b32.xlu0 %v476, 4
        %v542 = vpop.permute.xlu0 %541
        %543 = vrot.lane.b32.xlu0 %v477, 4
        %v544 = vpop.permute.xlu0 %543
        %545 = vrot.lane.b32.xlu0 %v478, 4
        %v546 = vpop.permute.xlu0 %545
        %547 = vrot.lane.b32.xlu0 %v479, 4
        %v548 = vpop.permute.xlu0 %547
        %549 = vrot.lane.b32.xlu0 %v480, 4
        %v550 = vpop.permute.xlu0 %549
        %551 = vrot.lane.b32.xlu0 %v481, 4
        %v552 = vpop.permute.xlu0 %551
        %553 = vrot.lane.b32.xlu0 %v482, 4
        %v554 = vpop.permute.xlu0 %553
        %555 = vrot.lane.b32.xlu0 %v483, 4
        %v556 = vpop.permute.xlu0 %555
        %557 = vrot.lane.b32.xlu0 %v484, 4
        %v558 = vpop.permute.xlu0 %557
        %559 = vrot.lane.b32.xlu0 %v485, 4
        %v560 = vpop.permute.xlu0 %559
        %561 = vrot.lane.b32.xlu0 %v486, 4
        %v562 = vpop.permute.xlu0 %561
        %563 = vrot.lane.b32.xlu0 %v487, 4
        %v564 = vpop.permute.xlu0 %563
        %565 = vrot.lane.b32.xlu0 %v488, 4
        %v566 = vpop.permute.xlu0 %565
        %567 = vrot.lane.b32.xlu0 %v489, 4
        %v568 = vpop.permute.xlu0 %567
        %569 = vrot.lane.b32.xlu0 %v490, 4
        %v570 = vpop.permute.xlu0 %569
        %571 = vrot.lane.b32.xlu0 %v491, 4
        %v572 = vpop.permute.xlu0 %571
        %573 = vrot.lane.b32.xlu0 %v492, 4
        %v574 = vpop.permute.xlu0 %573
        %575 = vrot.lane.b32.xlu0 %v493, 4
        %v576 = vpop.permute.xlu0 %575
        %577 = vrot.lane.b32.xlu0 %v494, 4
        %v578 = vpop.permute.xlu0 %577
        %579 = vrot.lane.b32.xlu0 %v495, 4
        %v580 = vpop.permute.xlu0 %579
        %581 = vrot.lane.b32.xlu0 %v496, 4
        %v582 = vpop.permute.xlu0 %581
        %583 = vrot.lane.b32.xlu0 %v497, 4
        %v584 = vpop.permute.xlu0 %583
        %585 = vrot.lane.b32.xlu0 %v498, 4
        %v586 = vpop.permute.xlu0 %585
        %587 = vrot.lane.b32.xlu0 %v499, 4
        %v588 = vpop.permute.xlu0 %587
        %589 = vrot.lane.b32.xlu0 %v500, 4
        %v590 = vpop.permute.xlu0 %589
        %vm621 = vcmask 64544
        %622 = vst.msk [vmem:[%s429] sm:$0xff] %vm621, %v532
        %623 = vst.msk [vmem:[%s429 + $0x8] sm:$0xff] %vm621, %v534
        %624 = vst.msk [vmem:[%s429 + $0x10] sm:$0xff] %vm621, %v536
        %625 = vst.msk [vmem:[%s429 + $0x18] sm:$0xff] %vm621, %v538
        %626 = vst.msk [vmem:[%s429 + $0x20] sm:$0xff] %vm621, %v540
        %627 = vst.msk [vmem:[%s429 + $0x28] sm:$0xff] %vm621, %v542
        %628 = vst.msk [vmem:[%s429 + $0x30] sm:$0xff] %vm621, %v544
        %629 = vst.msk [vmem:[%s429 + $0x38] sm:$0xff] %vm621, %v546
        %630 = vst.msk [vmem:[%s429 + $0x40] sm:$0xff] %vm621, %v548
        %631 = vst.msk [vmem:[%s429 + $0x48] sm:$0xff] %vm621, %v550
        %632 = vst.msk [vmem:[%s429 + $0x50] sm:$0xff] %vm621, %v552
        %633 = vst.msk [vmem:[%s429 + $0x58] sm:$0xff] %vm621, %v554
        %634 = vst.msk [vmem:[%s429 + $0x60] sm:$0xff] %vm621, %v556
        %635 = vst.msk [vmem:[%s429 + $0x68] sm:$0xff] %vm621, %v558
        %636 = vst.msk [vmem:[%s429 + $0x70] sm:$0xff] %vm621, %v560
        %637 = vst.msk [vmem:[%s429 + $0x78] sm:$0xff] %vm621, %v562
        %638 = vst.msk [vmem:[%s429 + $0x80] sm:$0xff] %vm621, %v564
        %639 = vst.msk [vmem:[%s429 + $0x88] sm:$0xff] %vm621, %v566
        %640 = vst.msk [vmem:[%s429 + $0x90] sm:$0xff] %vm621, %v568
        %641 = vst.msk [vmem:[%s429 + $0x98] sm:$0xff] %vm621, %v570
        %642 = vst.msk [vmem:[%s429 + $0xa0] sm:$0xff] %vm621, %v572
        %643 = vst.msk [vmem:[%s429 + $0xa8] sm:$0xff] %vm621, %v574
        %644 = vst.msk [vmem:[%s429 + $0xb0] sm:$0xff] %vm621, %v576
        %645 = vst.msk [vmem:[%s429 + $0xb8] sm:$0xff] %vm621, %v578
        %646 = vst.msk [vmem:[%s429 + $0xc0] sm:$0xff] %vm621, %v580
        %647 = vst.msk [vmem:[%s429 + $0xc8] sm:$0xff] %vm621, %v582
        %648 = vst.msk [vmem:[%s429 + $0xd0] sm:$0xff] %vm621, %v584
        %649 = vst.msk [vmem:[%s429 + $0xd8] sm:$0xff] %vm621, %v586
        %650 = vst.msk [vmem:[%s429 + $0xe0] sm:$0xff] %vm621, %v588
        %651 = vst.msk [vmem:[%s429 + $0xe8] sm:$0xff] %vm621, %v590
        %v652 = vld [vmem:[%s358] sm:$0xff]
        %v653 = vld [vmem:[%s358 + $0x8] sm:$0xff]
        %v654 = vsel %vm466, 0.0, %v652
        %v655 = vsel %vm466, 0.0, %v653
        %658 = vrot.lane.b32.xlu0 %v654, 4
        %v659 = vpop.permute.xlu0 %658
        %660 = vrot.lane.b32.xlu0 %v655, 4
        %v661 = vpop.permute.xlu0 %660
        %664 = vst.msk [vmem:[#allocation2] sm:$0xff] %vm621, %v659
        %665 = vst.msk [vmem:[#allocation2 + $0x8] sm:$0xff] %vm621, %v661
        %vm666 = vcmask 90176
        %667 = vst.msk [vmem:[#allocation2 + $0xf] sm:$0x1] %vm666, 0.0
        %668 = vst.msk [vmem:[#allocation2 + $0x1f] sm:$0x1] %vm666, 0.0
        %669 = vst.msk [vmem:[#allocation2 + $0x2f] sm:$0x1] %vm666, 0.0
        %670 = vst.msk [vmem:[#allocation2 + $0x3f] sm:$0x1] %vm666, 0.0
        %671 = vst.msk [vmem:[#allocation2 + $0x4f] sm:$0x1] %vm666, 0.0
        %672 = vst.msk [vmem:[#allocation2 + $0x5f] sm:$0x1] %vm666, 0.0
        %673 = vst.msk [vmem:[#allocation2 + $0x6f] sm:$0x1] %vm666, 0.0
        %674 = vst.msk [vmem:[#allocation2 + $0x7f] sm:$0x1] %vm666, 0.0
        %675 = vst.msk [vmem:[#allocation2 + $0x8f] sm:$0x1] %vm666, 0.0
        %676 = vst.msk [vmem:[#allocation2 + $0x9f] sm:$0x1] %vm666, 0.0
        %677 = vst.msk [vmem:[#allocation2 + $0xaf] sm:$0x1] %vm666, 0.0
        %678 = vst.msk [vmem:[#allocation2 + $0xbf] sm:$0x1] %vm666, 0.0
        %679 = vst.msk [vmem:[#allocation2 + $0xcf] sm:$0x1] %vm666, 0.0
        %680 = vst.msk [vmem:[#allocation2 + $0xdf] sm:$0x1] %vm666, 0.0
        %681 = vst.msk [vmem:[#allocation2 + $0xef] sm:$0x1] %vm666, 0.0
        %682 = vst.msk [vmem:[#allocation2 + $0xff] sm:$0x1] %vm666, 0.0
        %v683 = vld [vmem:[%s344 + $0x1] sm:$0xff]
        %v684 = vld [vmem:[%s344 + $0x9] sm:$0x7f]
        %v685 = vld [vmem:[%s344 + $0x11] sm:$0xff]
        %v686 = vld [vmem:[%s344 + $0x19] sm:$0x7f]
        %v687 = vld [vmem:[%s344 + $0x21] sm:$0xff]
        %v688 = vld [vmem:[%s344 + $0x29] sm:$0x7f]
        %v689 = vld [vmem:[%s344 + $0x31] sm:$0xff]
        %v690 = vld [vmem:[%s344 + $0x39] sm:$0x7f]
        %v691 = vld [vmem:[%s344 + $0x41] sm:$0xff]
        %v692 = vld [vmem:[%s344 + $0x49] sm:$0x7f]
        %v693 = vld [vmem:[%s344 + $0x51] sm:$0xff]
        %v694 = vld [vmem:[%s344 + $0x59] sm:$0x7f]
        %v695 = vld [vmem:[%s344 + $0x61] sm:$0xff]
        %v696 = vld [vmem:[%s344 + $0x69] sm:$0x7f]
        %v697 = vld [vmem:[%s344 + $0x71] sm:$0xff]
        %v698 = vld [vmem:[%s344 + $0x79] sm:$0x7f]
        %v699 = vld [vmem:[%s344 + $0x81] sm:$0xff]
        %v700 = vld [vmem:[%s344 + $0x89] sm:$0x7f]
        %v701 = vld [vmem:[%s344 + $0x91] sm:$0xff]
        %v702 = vld [vmem:[%s344 + $0x99] sm:$0x7f]
        %v703 = vld [vmem:[%s344 + $0xa1] sm:$0xff]
        %v704 = vld [vmem:[%s344 + $0xa9] sm:$0x7f]
        %v705 = vld [vmem:[%s344 + $0xb1] sm:$0xff]
        %v706 = vld [vmem:[%s344 + $0xb9] sm:$0x7f]
        %v707 = vld [vmem:[%s344 + $0xc1] sm:$0xff]
        %v708 = vld [vmem:[%s344 + $0xc9] sm:$0x7f]
        %v709 = vld [vmem:[%s344 + $0xd1] sm:$0xff]
        %v710 = vld [vmem:[%s344 + $0xd9] sm:$0x7f]
        %v711 = vld [vmem:[%s344 + $0xe1] sm:$0xff]
        %v712 = vld [vmem:[%s344 + $0xe9] sm:$0x7f]
        %743 = vrot.lane.b32.xlu0 %v683, 8
        %v744 = vpop.permute.xlu0 %743
        %745 = vrot.lane.b32.xlu0 %v684, 8
        %v746 = vpop.permute.xlu0 %745
        %747 = vrot.lane.b32.xlu0 %v685, 8
        %v748 = vpop.permute.xlu0 %747
        %749 = vrot.lane.b32.xlu0 %v686, 8
        %v750 = vpop.permute.xlu0 %749
        %751 = vrot.lane.b32.xlu0 %v687, 8
        %v752 = vpop.permute.xlu0 %751
        %753 = vrot.lane.b32.xlu0 %v688, 8
        %v754 = vpop.permute.xlu0 %753
        %755 = vrot.lane.b32.xlu0 %v689, 8
        %v756 = vpop.permute.xlu0 %755
        %757 = vrot.lane.b32.xlu0 %v690, 8
        %v758 = vpop.permute.xlu0 %757
        %759 = vrot.lane.b32.xlu0 %v691, 8
        %v760 = vpop.permute.xlu0 %759
        %761 = vrot.lane.b32.xlu0 %v692, 8
        %v762 = vpop.permute.xlu0 %761
        %763 = vrot.lane.b32.xlu0 %v693, 8
        %v764 = vpop.permute.xlu0 %763
        %765 = vrot.lane.b32.xlu0 %v694, 8
        %v766 = vpop.permute.xlu0 %765
        %767 = vrot.lane.b32.xlu0 %v695, 8
        %v768 = vpop.permute.xlu0 %767
        %769 = vrot.lane.b32.xlu0 %v696, 8
        %v770 = vpop.permute.xlu0 %769
        %771 = vrot.lane.b32.xlu0 %v697, 8
        %v772 = vpop.permute.xlu0 %771
        %773 = vrot.lane.b32.xlu0 %v698, 8
        %v774 = vpop.permute.xlu0 %773
        %775 = vrot.lane.b32.xlu0 %v699, 8
        %v776 = vpop.permute.xlu0 %775
        %777 = vrot.lane.b32.xlu0 %v700, 8
        %v778 = vpop.permute.xlu0 %777
        %779 = vrot.lane.b32.xlu0 %v701, 8
        %v780 = vpop.permute.xlu0 %779
        %781 = vrot.lane.b32.xlu0 %v702, 8
        %v782 = vpop.permute.xlu0 %781
        %783 = vrot.lane.b32.xlu0 %v703, 8
        %v784 = vpop.permute.xlu0 %783
        %785 = vrot.lane.b32.xlu0 %v704, 8
        %v786 = vpop.permute.xlu0 %785
        %787 = vrot.lane.b32.xlu0 %v705, 8
        %v788 = vpop.permute.xlu0 %787
        %789 = vrot.lane.b32.xlu0 %v706, 8
        %v790 = vpop.permute.xlu0 %789
        %791 = vrot.lane.b32.xlu0 %v707, 8
        %v792 = vpop.permute.xlu0 %791
        %793 = vrot.lane.b32.xlu0 %v708, 8
        %v794 = vpop.permute.xlu0 %793
        %795 = vrot.lane.b32.xlu0 %v709, 8
        %v796 = vpop.permute.xlu0 %795
        %797 = vrot.lane.b32.xlu0 %v710, 8
        %v798 = vpop.permute.xlu0 %797
        %799 = vrot.lane.b32.xlu0 %v711, 8
        %v800 = vpop.permute.xlu0 %799
        %801 = vrot.lane.b32.xlu0 %v712, 8
        %v802 = vpop.permute.xlu0 %801
        %vm833 = vcmask 97344
        %834 = vst.msk [vmem:[%s429] sm:$0xff] %vm833, %v744
        %vm835 = vcmask 96320
        %836 = vst.msk [vmem:[%s429 + $0x8] sm:$0x7f] %vm835, %v746
        %837 = vst.msk [vmem:[%s429 + $0x10] sm:$0xff] %vm833, %v748
        %838 = vst.msk [vmem:[%s429 + $0x18] sm:$0x7f] %vm835, %v750
        %839 = vst.msk [vmem:[%s429 + $0x20] sm:$0xff] %vm833, %v752
        %840 = vst.msk [vmem:[%s429 + $0x28] sm:$0x7f] %vm835, %v754
        %841 = vst.msk [vmem:[%s429 + $0x30] sm:$0xff] %vm833, %v756
        %842 = vst.msk [vmem:[%s429 + $0x38] sm:$0x7f] %vm835, %v758
        %843 = vst.msk [vmem:[%s429 + $0x40] sm:$0xff] %vm833, %v760
        %844 = vst.msk [vmem:[%s429 + $0x48] sm:$0x7f] %vm835, %v762
        %845 = vst.msk [vmem:[%s429 + $0x50] sm:$0xff] %vm833, %v764
        %846 = vst.msk [vmem:[%s429 + $0x58] sm:$0x7f] %vm835, %v766
        %847 = vst.msk [vmem:[%s429 + $0x60] sm:$0xff] %vm833, %v768
        %848 = vst.msk [vmem:[%s429 + $0x68] sm:$0x7f] %vm835, %v770
        %849 = vst.msk [vmem:[%s429 + $0x70] sm:$0xff] %vm833, %v772
        %850 = vst.msk [vmem:[%s429 + $0x78] sm:$0x7f] %vm835, %v774
        %851 = vst.msk [vmem:[%s429 + $0x80] sm:$0xff] %vm833, %v776
        %852 = vst.msk [vmem:[%s429 + $0x88] sm:$0x7f] %vm835, %v778
        %853 = vst.msk [vmem:[%s429 + $0x90] sm:$0xff] %vm833, %v780
        %854 = vst.msk [vmem:[%s429 + $0x98] sm:$0x7f] %vm835, %v782
        %855 = vst.msk [vmem:[%s429 + $0xa0] sm:$0xff] %vm833, %v784
        %856 = vst.msk [vmem:[%s429 + $0xa8] sm:$0x7f] %vm835, %v786
        %857 = vst.msk [vmem:[%s429 + $0xb0] sm:$0xff] %vm833, %v788
        %858 = vst.msk [vmem:[%s429 + $0xb8] sm:$0x7f] %vm835, %v790
        %859 = vst.msk [vmem:[%s429 + $0xc0] sm:$0xff] %vm833, %v792
        %860 = vst.msk [vmem:[%s429 + $0xc8] sm:$0x7f] %vm835, %v794
        %861 = vst.msk [vmem:[%s429 + $0xd0] sm:$0xff] %vm833, %v796
        %862 = vst.msk [vmem:[%s429 + $0xd8] sm:$0x7f] %vm835, %v798
        %863 = vst.msk [vmem:[%s429 + $0xe0] sm:$0xff] %vm833, %v800
        %864 = vst.msk [vmem:[%s429 + $0xe8] sm:$0x7f] %vm835, %v802
        %v865 = vld [vmem:[%s358 + $0x1] sm:$0xff]
        %v866 = vld [vmem:[%s358 + $0x9] sm:$0x7f]
        %v867 = vsel %vm466, 0.0, %v865
        %v868 = vsel %vm466, 0.0, %v866
        %871 = vrot.lane.b32.xlu0 %v867, 8
        %v872 = vpop.permute.xlu0 %871
        %873 = vrot.lane.b32.xlu0 %v868, 8
        %v874 = vpop.permute.xlu0 %873
        %877 = vst.msk [vmem:[#allocation2] sm:$0xff] %vm833, %v872
        %878 = vst.msk [vmem:[#allocation2 + $0x8] sm:$0x7f] %vm835, %v874
        %vm879 = vcmask 122976
        %880 = vst.msk [vmem:[#allocation2] sm:$0x1] %vm879, 0.0
        %881 = vst.msk [vmem:[#allocation2 + $0x10] sm:$0x1] %vm879, 0.0
        %882 = vst.msk [vmem:[#allocation2 + $0x20] sm:$0x1] %vm879, 0.0
        %883 = vst.msk [vmem:[#allocation2 + $0x30] sm:$0x1] %vm879, 0.0
        %884 = vst.msk [vmem:[#allocation2 + $0x40] sm:$0x1] %vm879, 0.0
        %885 = vst.msk [vmem:[#allocation2 + $0x50] sm:$0x1] %vm879, 0.0
        %886 = vst.msk [vmem:[#allocation2 + $0x60] sm:$0x1] %vm879, 0.0
        %887 = vst.msk [vmem:[#allocation2 + $0x70] sm:$0x1] %vm879, 0.0
        %888 = vst.msk [vmem:[#allocation2 + $0x80] sm:$0x1] %vm879, 0.0
        %889 = vst.msk [vmem:[#allocation2 + $0x90] sm:$0x1] %vm879, 0.0
        %890 = vst.msk [vmem:[#allocation2 + $0xa0] sm:$0x1] %vm879, 0.0
        %891 = vst.msk [vmem:[#allocation2 + $0xb0] sm:$0x1] %vm879, 0.0
        %892 = vst.msk [vmem:[#allocation2 + $0xc0] sm:$0x1] %vm879, 0.0
        %893 = vst.msk [vmem:[#allocation2 + $0xd0] sm:$0x1] %vm879, 0.0
        %894 = vst.msk [vmem:[#allocation2 + $0xe0] sm:$0x1] %vm879, 0.0
        %895 = vst.msk [vmem:[#allocation2 + $0xf0] sm:$0x1] %vm879, 0.0
        %v896 = vld [vmem:[%s344] sm:$0xff]
        %v897 = vld [vmem:[%s344 + $0x8] sm:$0x7f]
        %v898 = vld [vmem:[%s344 + $0x10] sm:$0xff]
        %v899 = vld [vmem:[%s344 + $0x18] sm:$0x7f]
        %v900 = vld [vmem:[%s344 + $0x20] sm:$0xff]
        %v901 = vld [vmem:[%s344 + $0x28] sm:$0x7f]
        %v902 = vld [vmem:[%s344 + $0x30] sm:$0xff]
        %v903 = vld [vmem:[%s344 + $0x38] sm:$0x7f]
        %v904 = vld [vmem:[%s344 + $0x40] sm:$0xff]
        %v905 = vld [vmem:[%s344 + $0x48] sm:$0x7f]
        %v906 = vld [vmem:[%s344 + $0x50] sm:$0xff]
        %v907 = vld [vmem:[%s344 + $0x58] sm:$0x7f]
        %v908 = vld [vmem:[%s344 + $0x60] sm:$0xff]
        %v909 = vld [vmem:[%s344 + $0x68] sm:$0x7f]
        %v910 = vld [vmem:[%s344 + $0x70] sm:$0xff]
        %v911 = vld [vmem:[%s344 + $0x78] sm:$0x7f]
        %v912 = vld [vmem:[%s344 + $0x80] sm:$0xff]
        %v913 = vld [vmem:[%s344 + $0x88] sm:$0x7f]
        %v914 = vld [vmem:[%s344 + $0x90] sm:$0xff]
        %v915 = vld [vmem:[%s344 + $0x98] sm:$0x7f]
        %v916 = vld [vmem:[%s344 + $0xa0] sm:$0xff]
        %v917 = vld [vmem:[%s344 + $0xa8] sm:$0x7f]
        %v918 = vld [vmem:[%s344 + $0xb0] sm:$0xff]
        %v919 = vld [vmem:[%s344 + $0xb8] sm:$0x7f]
        %v920 = vld [vmem:[%s344 + $0xc0] sm:$0xff]
        %v921 = vld [vmem:[%s344 + $0xc8] sm:$0x7f]
        %v922 = vld [vmem:[%s344 + $0xd0] sm:$0xff]
        %v923 = vld [vmem:[%s344 + $0xd8] sm:$0x7f]
        %v924 = vld [vmem:[%s344 + $0xe0] sm:$0xff]
        %v925 = vld [vmem:[%s344 + $0xe8] sm:$0x7f]
        %v926 = vld [vmem:[%s344 + $0xf0] sm:$0xff]
        %v927 = vld [vmem:[%s344 + $0xf8] sm:$0x7f]
        %960 = vrot.lane.b32.xlu0 %v896, 12
        %v961 = vpop.permute.xlu0 %960
        %962 = vrot.lane.b32.xlu0 %v897, 12
        %v963 = vpop.permute.xlu0 %962
        %964 = vrot.lane.b32.xlu0 %v898, 12
        %v965 = vpop.permute.xlu0 %964
        %966 = vrot.lane.b32.xlu0 %v899, 12
        %v967 = vpop.permute.xlu0 %966
        %968 = vrot.lane.b32.xlu0 %v900, 12
        %v969 = vpop.permute.xlu0 %968
        %970 = vrot.lane.b32.xlu0 %v901, 12
        %v971 = vpop.permute.xlu0 %970
        %972 = vrot.lane.b32.xlu0 %v902, 12
        %v973 = vpop.permute.xlu0 %972
        %974 = vrot.lane.b32.xlu0 %v903, 12
        %v975 = vpop.permute.xlu0 %974
        %976 = vrot.lane.b32.xlu0 %v904, 12
        %v977 = vpop.permute.xlu0 %976
        %978 = vrot.lane.b32.xlu0 %v905, 12
        %v979 = vpop.permute.xlu0 %978
        %980 = vrot.lane.b32.xlu0 %v906, 12
        %v981 = vpop.permute.xlu0 %980
        %982 = vrot.lane.b32.xlu0 %v907, 12
        %v983 = vpop.permute.xlu0 %982
        %984 = vrot.lane.b32.xlu0 %v908, 12
        %v985 = vpop.permute.xlu0 %984
        %986 = vrot.lane.b32.xlu0 %v909, 12
        %v987 = vpop.permute.xlu0 %986
        %988 = vrot.lane.b32.xlu0 %v910, 12
        %v989 = vpop.permute.xlu0 %988
        %990 = vrot.lane.b32.xlu0 %v911, 12
        %v991 = vpop.permute.xlu0 %990
        %992 = vrot.lane.b32.xlu0 %v912, 12
        %v993 = vpop.permute.xlu0 %992
        %994 = vrot.lane.b32.xlu0 %v913, 12
        %v995 = vpop.permute.xlu0 %994
        %996 = vrot.lane.b32.xlu0 %v914, 12
        %v997 = vpop.permute.xlu0 %996
        %998 = vrot.lane.b32.xlu0 %v915, 12
        %v999 = vpop.permute.xlu0 %998
        %1000 = vrot.lane.b32.xlu0 %v916, 12
        %v1001 = vpop.permute.xlu0 %1000
        %1002 = vrot.lane.b32.xlu0 %v917, 12
        %v1003 = vpop.permute.xlu0 %1002
        %1004 = vrot.lane.b32.xlu0 %v918, 12
        %v1005 = vpop.permute.xlu0 %1004
        %1006 = vrot.lane.b32.xlu0 %v919, 12
        %v1007 = vpop.permute.xlu0 %1006
        %1008 = vrot.lane.b32.xlu0 %v920, 12
        %v1009 = vpop.permute.xlu0 %1008
        %1010 = vrot.lane.b32.xlu0 %v921, 12
        %v1011 = vpop.permute.xlu0 %1010
        %1012 = vrot.lane.b32.xlu0 %v922, 12
        %v1013 = vpop.permute.xlu0 %1012
        %1014 = vrot.lane.b32.xlu0 %v923, 12
        %v1015 = vpop.permute.xlu0 %1014
        %1016 = vrot.lane.b32.xlu0 %v924, 12
        %v1017 = vpop.permute.xlu0 %1016
        %1018 = vrot.lane.b32.xlu0 %v925, 12
        %v1019 = vpop.permute.xlu0 %1018
        %1020 = vrot.lane.b32.xlu0 %v926, 12
        %v1021 = vpop.permute.xlu0 %1020
        %1022 = vrot.lane.b32.xlu0 %v927, 12
        %v1023 = vpop.permute.xlu0 %1022
        %vm1056 = vcmask 130144
        %1057 = vst.msk [vmem:[#allocation2 + $0x1] sm:$0xff] %vm1056, %v961
        %vm1058 = vcmask 129120
        %1059 = vst.msk [vmem:[#allocation2 + $0x9] sm:$0x7f] %vm1058, %v963
        %1060 = vst.msk [vmem:[#allocation2 + $0x11] sm:$0xff] %vm1056, %v965
        %1061 = vst.msk [vmem:[#allocation2 + $0x19] sm:$0x7f] %vm1058, %v967
        %1062 = vst.msk [vmem:[#allocation2 + $0x21] sm:$0xff] %vm1056, %v969
        %1063 = vst.msk [vmem:[#allocation2 + $0x29] sm:$0x7f] %vm1058, %v971
        %1064 = vst.msk [vmem:[#allocation2 + $0x31] sm:$0xff] %vm1056, %v973
        %1065 = vst.msk [vmem:[#allocation2 + $0x39] sm:$0x7f] %vm1058, %v975
        %1066 = vst.msk [vmem:[#allocation2 + $0x41] sm:$0xff] %vm1056, %v977
        %1067 = vst.msk [vmem:[#allocation2 + $0x49] sm:$0x7f] %vm1058, %v979
        %1068 = vst.msk [vmem:[#allocation2 + $0x51] sm:$0xff] %vm1056, %v981
        %1069 = vst.msk [vmem:[#allocation2 + $0x59] sm:$0x7f] %vm1058, %v983
        %1070 = vst.msk [vmem:[#allocation2 + $0x61] sm:$0xff] %vm1056, %v985
        %1071 = vst.msk [vmem:[#allocation2 + $0x69] sm:$0x7f] %vm1058, %v987
        %1072 = vst.msk [vmem:[#allocation2 + $0x71] sm:$0xff] %vm1056, %v989
        %1073 = vst.msk [vmem:[#allocation2 + $0x79] sm:$0x7f] %vm1058, %v991
        %1074 = vst.msk [vmem:[#allocation2 + $0x81] sm:$0xff] %vm1056, %v993
        %1075 = vst.msk [vmem:[#allocation2 + $0x89] sm:$0x7f] %vm1058, %v995
        %1076 = vst.msk [vmem:[#allocation2 + $0x91] sm:$0xff] %vm1056, %v997
        %1077 = vst.msk [vmem:[#allocation2 + $0x99] sm:$0x7f] %vm1058, %v999
        %1078 = vst.msk [vmem:[#allocation2 + $0xa1] sm:$0xff] %vm1056, %v1001
        %1079 = vst.msk [vmem:[#allocation2 + $0xa9] sm:$0x7f] %vm1058, %v1003
        %1080 = vst.msk [vmem:[#allocation2 + $0xb1] sm:$0xff] %vm1056, %v1005
        %1081 = vst.msk [vmem:[#allocation2 + $0xb9] sm:$0x7f] %vm1058, %v1007
        %1082 = vst.msk [vmem:[#allocation2 + $0xc1] sm:$0xff] %vm1056, %v1009
        %1083 = vst.msk [vmem:[#allocation2 + $0xc9] sm:$0x7f] %vm1058, %v1011
        %1084 = vst.msk [vmem:[#allocation2 + $0xd1] sm:$0xff] %vm1056, %v1013
        %1085 = vst.msk [vmem:[#allocation2 + $0xd9] sm:$0x7f] %vm1058, %v1015
        %1086 = vst.msk [vmem:[#allocation2 + $0xe1] sm:$0xff] %vm1056, %v1017
        %1087 = vst.msk [vmem:[#allocation2 + $0xe9] sm:$0x7f] %vm1058, %v1019
        %1088 = vst.msk [vmem:[#allocation2 + $0xf1] sm:$0xff] %vm1056, %v1021
        %1089 = vst.msk [vmem:[#allocation2 + $0xf9] sm:$0x7f] %vm1058, %v1023
        %v1090 = vld [vmem:[%s344] sm:$0xff]
        %v1091 = vld [vmem:[%s344 + $0x8] sm:$0xff]
        %v1092 = vld [vmem:[%s344 + $0x10] sm:$0xff]
        %v1093 = vld [vmem:[%s344 + $0x18] sm:$0xff]
        %v1094 = vld [vmem:[%s344 + $0x20] sm:$0xff]
        %v1095 = vld [vmem:[%s344 + $0x28] sm:$0xff]
        %v1096 = vld [vmem:[%s344 + $0x30] sm:$0xff]
        %v1097 = vld [vmem:[%s344 + $0x38] sm:$0xff]
        %v1098 = vld [vmem:[%s344 + $0x40] sm:$0xff]
        %v1099 = vld [vmem:[%s344 + $0x48] sm:$0xff]
        %v1100 = vld [vmem:[%s344 + $0x50] sm:$0xff]
        %v1101 = vld [vmem:[%s344 + $0x58] sm:$0xff]
        %v1102 = vld [vmem:[%s344 + $0x60] sm:$0xff]
        %v1103 = vld [vmem:[%s344 + $0x68] sm:$0xff]
        %v1104 = vld [vmem:[%s344 + $0x70] sm:$0xff]
        %v1105 = vld [vmem:[%s344 + $0x78] sm:$0xff]
        %v1106 = vld [vmem:[%s344 + $0x80] sm:$0xff]
        %v1107 = vld [vmem:[%s344 + $0x88] sm:$0xff]
        %v1108 = vld [vmem:[%s344 + $0x90] sm:$0xff]
        %v1109 = vld [vmem:[%s344 + $0x98] sm:$0xff]
        %v1110 = vld [vmem:[%s344 + $0xa0] sm:$0xff]
        %v1111 = vld [vmem:[%s344 + $0xa8] sm:$0xff]
        %v1112 = vld [vmem:[%s344 + $0xb0] sm:$0xff]
        %v1113 = vld [vmem:[%s344 + $0xb8] sm:$0xff]
        %v1114 = vld [vmem:[%s344 + $0xc0] sm:$0xff]
        %v1115 = vld [vmem:[%s344 + $0xc8] sm:$0xff]
        %v1116 = vld [vmem:[%s344 + $0xd0] sm:$0xff]
        %v1117 = vld [vmem:[%s344 + $0xd8] sm:$0xff]
        %v1118 = vld [vmem:[%s344 + $0xe0] sm:$0xff]
        %v1119 = vld [vmem:[%s344 + $0xe8] sm:$0xff]
        %v1120 = vld [vmem:[%s344 + $0xf0] sm:$0xff]
        %v1121 = vld [vmem:[%s344 + $0xf8] sm:$0xff]
        %1154 = vrot.lane.b32.xlu0 %v1090, 16
        %v1155 = vpop.permute.xlu0 %1154
        %1156 = vrot.lane.b32.xlu0 %v1091, 16
        %v1157 = vpop.permute.xlu0 %1156
        %1158 = vrot.lane.b32.xlu0 %v1092, 16
        %v1159 = vpop.permute.xlu0 %1158
        %1160 = vrot.lane.b32.xlu0 %v1093, 16
        %v1161 = vpop.permute.xlu0 %1160
        %1162 = vrot.lane.b32.xlu0 %v1094, 16
        %v1163 = vpop.permute.xlu0 %1162
        %1164 = vrot.lane.b32.xlu0 %v1095, 16
        %v1165 = vpop.permute.xlu0 %1164
        %1166 = vrot.lane.b32.xlu0 %v1096, 16
        %v1167 = vpop.permute.xlu0 %1166
        %1168 = vrot.lane.b32.xlu0 %v1097, 16
        %v1169 = vpop.permute.xlu0 %1168
        %1170 = vrot.lane.b32.xlu0 %v1098, 16
        %v1171 = vpop.permute.xlu0 %1170
        %1172 = vrot.lane.b32.xlu0 %v1099, 16
        %v1173 = vpop.permute.xlu0 %1172
        %1174 = vrot.lane.b32.xlu0 %v1100, 16
        %v1175 = vpop.permute.xlu0 %1174
        %1176 = vrot.lane.b32.xlu0 %v1101, 16
        %v1177 = vpop.permute.xlu0 %1176
        %1178 = vrot.lane.b32.xlu0 %v1102, 16
        %v1179 = vpop.permute.xlu0 %1178
        %1180 = vrot.lane.b32.xlu0 %v1103, 16
        %v1181 = vpop.permute.xlu0 %1180
        %1182 = vrot.lane.b32.xlu0 %v1104, 16
        %v1183 = vpop.permute.xlu0 %1182
        %1184 = vrot.lane.b32.xlu0 %v1105, 16
        %v1185 = vpop.permute.xlu0 %1184
        %1186 = vrot.lane.b32.xlu0 %v1106, 16
        %v1187 = vpop.permute.xlu0 %1186
        %1188 = vrot.lane.b32.xlu0 %v1107, 16
        %v1189 = vpop.permute.xlu0 %1188
        %1190 = vrot.lane.b32.xlu0 %v1108, 16
        %v1191 = vpop.permute.xlu0 %1190
        %1192 = vrot.lane.b32.xlu0 %v1109, 16
        %v1193 = vpop.permute.xlu0 %1192
        %1194 = vrot.lane.b32.xlu0 %v1110, 16
        %v1195 = vpop.permute.xlu0 %1194
        %1196 = vrot.lane.b32.xlu0 %v1111, 16
        %v1197 = vpop.permute.xlu0 %1196
        %1198 = vrot.lane.b32.xlu0 %v1112, 16
        %v1199 = vpop.permute.xlu0 %1198
        %1200 = vrot.lane.b32.xlu0 %v1113, 16
        %v1201 = vpop.permute.xlu0 %1200
        %1202 = vrot.lane.b32.xlu0 %v1114, 16
        %v1203 = vpop.permute.xlu0 %1202
        %1204 = vrot.lane.b32.xlu0 %v1115, 16
        %v1205 = vpop.permute.xlu0 %1204
        %1206 = vrot.lane.b32.xlu0 %v1116, 16
        %v1207 = vpop.permute.xlu0 %1206
        %1208 = vrot.lane.b32.xlu0 %v1117, 16
        %v1209 = vpop.permute.xlu0 %1208
        %1210 = vrot.lane.b32.xlu0 %v1118, 16
        %v1211 = vpop.permute.xlu0 %1210
        %1212 = vrot.lane.b32.xlu0 %v1119, 16
        %v1213 = vpop.permute.xlu0 %1212
        %1214 = vrot.lane.b32.xlu0 %v1120, 16
        %v1215 = vpop.permute.xlu0 %1214
        %1216 = vrot.lane.b32.xlu0 %v1121, 16
        %v1217 = vpop.permute.xlu0 %1216
        %vm1250 = vcmask 162944
        %1251 = vst.msk [vmem:[#allocation2] sm:$0xff] %vm1250, %v1155
        %1252 = vst.msk [vmem:[#allocation2 + $0x8] sm:$0xff] %vm1250, %v1157
        %1253 = vst.msk [vmem:[#allocation2 + $0x10] sm:$0xff] %vm1250, %v1159
        %1254 = vst.msk [vmem:[#allocation2 + $0x18] sm:$0xff] %vm1250, %v1161
        %1255 = vst.msk [vmem:[#allocation2 + $0x20] sm:$0xff] %vm1250, %v1163
        %1256 = vst.msk [vmem:[#allocation2 + $0x28] sm:$0xff] %vm1250, %v1165
        %1257 = vst.msk [vmem:[#allocation2 + $0x30] sm:$0xff] %vm1250, %v1167
        %1258 = vst.msk [vmem:[#allocation2 + $0x38] sm:$0xff] %vm1250, %v1169
        %1259 = vst.msk [vmem:[#allocation2 + $0x40] sm:$0xff] %vm1250, %v1171
        %1260 = vst.msk [vmem:[#allocation2 + $0x48] sm:$0xff] %vm1250, %v1173
        %1261 = vst.msk [vmem:[#allocation2 + $0x50] sm:$0xff] %vm1250, %v1175
        %1262 = vst.msk [vmem:[#allocation2 + $0x58] sm:$0xff] %vm1250, %v1177
        %1263 = vst.msk [vmem:[#allocation2 + $0x60] sm:$0xff] %vm1250, %v1179
        %1264 = vst.msk [vmem:[#allocation2 + $0x68] sm:$0xff] %vm1250, %v1181
        %1265 = vst.msk [vmem:[#allocation2 + $0x70] sm:$0xff] %vm1250, %v1183
        %1266 = vst.msk [vmem:[#allocation2 + $0x78] sm:$0xff] %vm1250, %v1185
        %1267 = vst.msk [vmem:[#allocation2 + $0x80] sm:$0xff] %vm1250, %v1187
        %1268 = vst.msk [vmem:[#allocation2 + $0x88] sm:$0xff] %vm1250, %v1189
        %1269 = vst.msk [vmem:[#allocation2 + $0x90] sm:$0xff] %vm1250, %v1191
        %1270 = vst.msk [vmem:[#allocation2 + $0x98] sm:$0xff] %vm1250, %v1193
        %1271 = vst.msk [vmem:[#allocation2 + $0xa0] sm:$0xff] %vm1250, %v1195
        %1272 = vst.msk [vmem:[#allocation2 + $0xa8] sm:$0xff] %vm1250, %v1197
        %1273 = vst.msk [vmem:[#allocation2 + $0xb0] sm:$0xff] %vm1250, %v1199
        %1274 = vst.msk [vmem:[#allocation2 + $0xb8] sm:$0xff] %vm1250, %v1201
        %1275 = vst.msk [vmem:[#allocation2 + $0xc0] sm:$0xff] %vm1250, %v1203
        %1276 = vst.msk [vmem:[#allocation2 + $0xc8] sm:$0xff] %vm1250, %v1205
        %1277 = vst.msk [vmem:[#allocation2 + $0xd0] sm:$0xff] %vm1250, %v1207
        %1278 = vst.msk [vmem:[#allocation2 + $0xd8] sm:$0xff] %vm1250, %v1209
        %1279 = vst.msk [vmem:[#allocation2 + $0xe0] sm:$0xff] %vm1250, %v1211
        %1280 = vst.msk [vmem:[#allocation2 + $0xe8] sm:$0xff] %vm1250, %v1213
        %1281 = vst.msk [vmem:[#allocation2 + $0xf0] sm:$0xff] %vm1250, %v1215
        %1282 = vst.msk [vmem:[#allocation2 + $0xf8] sm:$0xff] %vm1250, %v1217
        %vm1283 = vcmask 188576
        %1284 = vst.msk [vmem:[#allocation2 + $0xf] sm:$0x1] %vm1283, 0.0
        %1285 = vst.msk [vmem:[#allocation2 + $0x1f] sm:$0x1] %vm1283, 0.0
        %1286 = vst.msk [vmem:[#allocation2 + $0x2f] sm:$0x1] %vm1283, 0.0
        %1287 = vst.msk [vmem:[#allocation2 + $0x3f] sm:$0x1] %vm1283, 0.0
        %1288 = vst.msk [vmem:[#allocation2 + $0x4f] sm:$0x1] %vm1283, 0.0
        %1289 = vst.msk [vmem:[#allocation2 + $0x5f] sm:$0x1] %vm1283, 0.0
        %1290 = vst.msk [vmem:[#allocation2 + $0x6f] sm:$0x1] %vm1283, 0.0
        %1291 = vst.msk [vmem:[#allocation2 + $0x7f] sm:$0x1] %vm1283, 0.0
        %1292 = vst.msk [vmem:[#allocation2 + $0x8f] sm:$0x1] %vm1283, 0.0
        %1293 = vst.msk [vmem:[#allocation2 + $0x9f] sm:$0x1] %vm1283, 0.0
        %1294 = vst.msk [vmem:[#allocation2 + $0xaf] sm:$0x1] %vm1283, 0.0
        %1295 = vst.msk [vmem:[#allocation2 + $0xbf] sm:$0x1] %vm1283, 0.0
        %1296 = vst.msk [vmem:[#allocation2 + $0xcf] sm:$0x1] %vm1283, 0.0
        %1297 = vst.msk [vmem:[#allocation2 + $0xdf] sm:$0x1] %vm1283, 0.0
        %1298 = vst.msk [vmem:[#allocation2 + $0xef] sm:$0x1] %vm1283, 0.0
        %1299 = vst.msk [vmem:[#allocation2 + $0xff] sm:$0x1] %vm1283, 0.0
        %v1300 = vld [vmem:[%s344 + $0x1] sm:$0xff]
        %v1301 = vld [vmem:[%s344 + $0x9] sm:$0x7f]
        %v1302 = vld [vmem:[%s344 + $0x11] sm:$0xff]
        %v1303 = vld [vmem:[%s344 + $0x19] sm:$0x7f]
        %v1304 = vld [vmem:[%s344 + $0x21] sm:$0xff]
        %v1305 = vld [vmem:[%s344 + $0x29] sm:$0x7f]
        %v1306 = vld [vmem:[%s344 + $0x31] sm:$0xff]
        %v1307 = vld [vmem:[%s344 + $0x39] sm:$0x7f]
        %v1308 = vld [vmem:[%s344 + $0x41] sm:$0xff]
        %v1309 = vld [vmem:[%s344 + $0x49] sm:$0x7f]
        %v1310 = vld [vmem:[%s344 + $0x51] sm:$0xff]
        %v1311 = vld [vmem:[%s344 + $0x59] sm:$0x7f]
        %v1312 = vld [vmem:[%s344 + $0x61] sm:$0xff]
        %v1313 = vld [vmem:[%s344 + $0x69] sm:$0x7f]
        %v1314 = vld [vmem:[%s344 + $0x71] sm:$0xff]
        %v1315 = vld [vmem:[%s344 + $0x79] sm:$0x7f]
        %v1316 = vld [vmem:[%s344 + $0x81] sm:$0xff]
        %v1317 = vld [vmem:[%s344 + $0x89] sm:$0x7f]
        %v1318 = vld [vmem:[%s344 + $0x91] sm:$0xff]
        %v1319 = vld [vmem:[%s344 + $0x99] sm:$0x7f]
        %v1320 = vld [vmem:[%s344 + $0xa1] sm:$0xff]
        %v1321 = vld [vmem:[%s344 + $0xa9] sm:$0x7f]
        %v1322 = vld [vmem:[%s344 + $0xb1] sm:$0xff]
        %v1323 = vld [vmem:[%s344 + $0xb9] sm:$0x7f]
        %v1324 = vld [vmem:[%s344 + $0xc1] sm:$0xff]
        %v1325 = vld [vmem:[%s344 + $0xc9] sm:$0x7f]
        %v1326 = vld [vmem:[%s344 + $0xd1] sm:$0xff]
        %v1327 = vld [vmem:[%s344 + $0xd9] sm:$0x7f]
        %v1328 = vld [vmem:[%s344 + $0xe1] sm:$0xff]
        %v1329 = vld [vmem:[%s344 + $0xe9] sm:$0x7f]
        %v1330 = vld [vmem:[%s344 + $0xf1] sm:$0xff]
        %v1331 = vld [vmem:[%s344 + $0xf9] sm:$0x7f]
        %1364 = vrot.lane.b32.xlu0 %v1300, 20
        %v1365 = vpop.permute.xlu0 %1364
        %1366 = vrot.lane.b32.xlu0 %v1301, 20
        %v1367 = vpop.permute.xlu0 %1366
        %1368 = vrot.lane.b32.xlu0 %v1302, 20
        %v1369 = vpop.permute.xlu0 %1368
        %1370 = vrot.lane.b32.xlu0 %v1303, 20
        %v1371 = vpop.permute.xlu0 %1370
        %1372 = vrot.lane.b32.xlu0 %v1304, 20
        %v1373 = vpop.permute.xlu0 %1372
        %1374 = vrot.lane.b32.xlu0 %v1305, 20
        %v1375 = vpop.permute.xlu0 %1374
        %1376 = vrot.lane.b32.xlu0 %v1306, 20
        %v1377 = vpop.permute.xlu0 %1376
        %1378 = vrot.lane.b32.xlu0 %v1307, 20
        %v1379 = vpop.permute.xlu0 %1378
        %1380 = vrot.lane.b32.xlu0 %v1308, 20
        %v1381 = vpop.permute.xlu0 %1380
        %1382 = vrot.lane.b32.xlu0 %v1309, 20
        %v1383 = vpop.permute.xlu0 %1382
        %1384 = vrot.lane.b32.xlu0 %v1310, 20
        %v1385 = vpop.permute.xlu0 %1384
        %1386 = vrot.lane.b32.xlu0 %v1311, 20
        %v1387 = vpop.permute.xlu0 %1386
        %1388 = vrot.lane.b32.xlu0 %v1312, 20
        %v1389 = vpop.permute.xlu0 %1388
        %1390 = vrot.lane.b32.xlu0 %v1313, 20
        %v1391 = vpop.permute.xlu0 %1390
        %1392 = vrot.lane.b32.xlu0 %v1314, 20
        %v1393 = vpop.permute.xlu0 %1392
        %1394 = vrot.lane.b32.xlu0 %v1315, 20
        %v1395 = vpop.permute.xlu0 %1394
        %1396 = vrot.lane.b32.xlu0 %v1316, 20
        %v1397 = vpop.permute.xlu0 %1396
        %1398 = vrot.lane.b32.xlu0 %v1317, 20
        %v1399 = vpop.permute.xlu0 %1398
        %1400 = vrot.lane.b32.xlu0 %v1318, 20
        %v1401 = vpop.permute.xlu0 %1400
        %1402 = vrot.lane.b32.xlu0 %v1319, 20
        %v1403 = vpop.permute.xlu0 %1402
        %1404 = vrot.lane.b32.xlu0 %v1320, 20
        %v1405 = vpop.permute.xlu0 %1404
        %1406 = vrot.lane.b32.xlu0 %v1321, 20
        %v1407 = vpop.permute.xlu0 %1406
        %1408 = vrot.lane.b32.xlu0 %v1322, 20
        %v1409 = vpop.permute.xlu0 %1408
        %1410 = vrot.lane.b32.xlu0 %v1323, 20
        %v1411 = vpop.permute.xlu0 %1410
        %1412 = vrot.lane.b32.xlu0 %v1324, 20
        %v1413 = vpop.permute.xlu0 %1412
        %1414 = vrot.lane.b32.xlu0 %v1325, 20
        %v1415 = vpop.permute.xlu0 %1414
        %1416 = vrot.lane.b32.xlu0 %v1326, 20
        %v1417 = vpop.permute.xlu0 %1416
        %1418 = vrot.lane.b32.xlu0 %v1327, 20
        %v1419 = vpop.permute.xlu0 %1418
        %1420 = vrot.lane.b32.xlu0 %v1328, 20
        %v1421 = vpop.permute.xlu0 %1420
        %1422 = vrot.lane.b32.xlu0 %v1329, 20
        %v1423 = vpop.permute.xlu0 %1422
        %1424 = vrot.lane.b32.xlu0 %v1330, 20
        %v1425 = vpop.permute.xlu0 %1424
        %1426 = vrot.lane.b32.xlu0 %v1331, 20
        %v1427 = vpop.permute.xlu0 %1426
        %vm1460 = vcmask 195744
        %1461 = vst.msk [vmem:[#allocation2] sm:$0xff] %vm1460, %v1365
        %vm1462 = vcmask 194720
        %1463 = vst.msk [vmem:[#allocation2 + $0x8] sm:$0x7f] %vm1462, %v1367
        %1464 = vst.msk [vmem:[#allocation2 + $0x10] sm:$0xff] %vm1460, %v1369
        %1465 = vst.msk [vmem:[#allocation2 + $0x18] sm:$0x7f] %vm1462, %v1371
        %1466 = vst.msk [vmem:[#allocation2 + $0x20] sm:$0xff] %vm1460, %v1373
        %1467 = vst.msk [vmem:[#allocation2 + $0x28] sm:$0x7f] %vm1462, %v1375
        %1468 = vst.msk [vmem:[#allocation2 + $0x30] sm:$0xff] %vm1460, %v1377
        %1469 = vst.msk [vmem:[#allocation2 + $0x38] sm:$0x7f] %vm1462, %v1379
        %1470 = vst.msk [vmem:[#allocation2 + $0x40] sm:$0xff] %vm1460, %v1381
        %1471 = vst.msk [vmem:[#allocation2 + $0x48] sm:$0x7f] %vm1462, %v1383
        %1472 = vst.msk [vmem:[#allocation2 + $0x50] sm:$0xff] %vm1460, %v1385
        %1473 = vst.msk [vmem:[#allocation2 + $0x58] sm:$0x7f] %vm1462, %v1387
        %1474 = vst.msk [vmem:[#allocation2 + $0x60] sm:$0xff] %vm1460, %v1389
        %1475 = vst.msk [vmem:[#allocation2 + $0x68] sm:$0x7f] %vm1462, %v1391
        %1476 = vst.msk [vmem:[#allocation2 + $0x70] sm:$0xff] %vm1460, %v1393
        %1477 = vst.msk [vmem:[#allocation2 + $0x78] sm:$0x7f] %vm1462, %v1395
        %1478 = vst.msk [vmem:[#allocation2 + $0x80] sm:$0xff] %vm1460, %v1397
        %1479 = vst.msk [vmem:[#allocation2 + $0x88] sm:$0x7f] %vm1462, %v1399
        %1480 = vst.msk [vmem:[#allocation2 + $0x90] sm:$0xff] %vm1460, %v1401
        %1481 = vst.msk [vmem:[#allocation2 + $0x98] sm:$0x7f] %vm1462, %v1403
        %1482 = vst.msk [vmem:[#allocation2 + $0xa0] sm:$0xff] %vm1460, %v1405
        %1483 = vst.msk [vmem:[#allocation2 + $0xa8] sm:$0x7f] %vm1462, %v1407
        %1484 = vst.msk [vmem:[#allocation2 + $0xb0] sm:$0xff] %vm1460, %v1409
        %1485 = vst.msk [vmem:[#allocation2 + $0xb8] sm:$0x7f] %vm1462, %v1411
        %1486 = vst.msk [vmem:[#allocation2 + $0xc0] sm:$0xff] %vm1460, %v1413
        %1487 = vst.msk [vmem:[#allocation2 + $0xc8] sm:$0x7f] %vm1462, %v1415
        %1488 = vst.msk [vmem:[#allocation2 + $0xd0] sm:$0xff] %vm1460, %v1417
        %1489 = vst.msk [vmem:[#allocation2 + $0xd8] sm:$0x7f] %vm1462, %v1419
        %1490 = vst.msk [vmem:[#allocation2 + $0xe0] sm:$0xff] %vm1460, %v1421
        %1491 = vst.msk [vmem:[#allocation2 + $0xe8] sm:$0x7f] %vm1462, %v1423
        %1492 = vst.msk [vmem:[#allocation2 + $0xf0] sm:$0xff] %vm1460, %v1425
        %1493 = vst.msk [vmem:[#allocation2 + $0xf8] sm:$0x7f] %vm1462, %v1427
        %vm1494 = vcmask 221376
        %1495 = vst.msk [vmem:[#allocation2] sm:$0x1] %vm1494, 0.0
        %1496 = vst.msk [vmem:[#allocation2 + $0x10] sm:$0x1] %vm1494, 0.0
        %1497 = vst.msk [vmem:[#allocation2 + $0x20] sm:$0x1] %vm1494, 0.0
        %1498 = vst.msk [vmem:[#allocation2 + $0x30] sm:$0x1] %vm1494, 0.0
        %1499 = vst.msk [vmem:[#allocation2 + $0x40] sm:$0x1] %vm1494, 0.0
        %1500 = vst.msk [vmem:[#allocation2 + $0x50] sm:$0x1] %vm1494, 0.0
        %1501 = vst.msk [vmem:[#allocation2 + $0x60] sm:$0x1] %vm1494, 0.0
        %1502 = vst.msk [vmem:[#allocation2 + $0x70] sm:$0x1] %vm1494, 0.0
        %1503 = vst.msk [vmem:[#allocation2 + $0x80] sm:$0x1] %vm1494, 0.0
        %1504 = vst.msk [vmem:[#allocation2 + $0x90] sm:$0x1] %vm1494, 0.0
        %1505 = vst.msk [vmem:[#allocation2 + $0xa0] sm:$0x1] %vm1494, 0.0
        %1506 = vst.msk [vmem:[#allocation2 + $0xb0] sm:$0x1] %vm1494, 0.0
        %1507 = vst.msk [vmem:[#allocation2 + $0xc0] sm:$0x1] %vm1494, 0.0
        %1508 = vst.msk [vmem:[#allocation2 + $0xd0] sm:$0x1] %vm1494, 0.0
        %1509 = vst.msk [vmem:[#allocation2 + $0xe0] sm:$0x1] %vm1494, 0.0
        %1510 = vst.msk [vmem:[#allocation2 + $0xf0] sm:$0x1] %vm1494, 0.0
        %s1511 = scalar_lea.vmem %s344, 16
        %v1512 = vld [vmem:[%s1511] sm:$0xff]
        %v1513 = vld [vmem:[%s1511 + $0x8] sm:$0x7f]
        %v1514 = vld [vmem:[%s1511 + $0x10] sm:$0xff]
        %v1515 = vld [vmem:[%s1511 + $0x18] sm:$0x7f]
        %v1516 = vld [vmem:[%s1511 + $0x20] sm:$0xff]
        %v1517 = vld [vmem:[%s1511 + $0x28] sm:$0x7f]
        %v1518 = vld [vmem:[%s1511 + $0x30] sm:$0xff]
        %v1519 = vld [vmem:[%s1511 + $0x38] sm:$0x7f]
        %v1520 = vld [vmem:[%s1511 + $0x40] sm:$0xff]
        %v1521 = vld [vmem:[%s1511 + $0x48] sm:$0x7f]
        %v1522 = vld [vmem:[%s1511 + $0x50] sm:$0xff]
        %v1523 = vld [vmem:[%s1511 + $0x58] sm:$0x7f]
        %v1524 = vld [vmem:[%s1511 + $0x60] sm:$0xff]
        %v1525 = vld [vmem:[%s1511 + $0x68] sm:$0x7f]
        %v1526 = vld [vmem:[%s1511 + $0x70] sm:$0xff]
        %v1527 = vld [vmem:[%s1511 + $0x78] sm:$0x7f]
        %v1528 = vld [vmem:[%s1511 + $0x80] sm:$0xff]
        %v1529 = vld [vmem:[%s1511 + $0x88] sm:$0x7f]
        %v1530 = vld [vmem:[%s1511 + $0x90] sm:$0xff]
        %v1531 = vld [vmem:[%s1511 + $0x98] sm:$0x7f]
        %v1532 = vld [vmem:[%s1511 + $0xa0] sm:$0xff]
        %v1533 = vld [vmem:[%s1511 + $0xa8] sm:$0x7f]
        %v1534 = vld [vmem:[%s1511 + $0xb0] sm:$0xff]
        %v1535 = vld [vmem:[%s1511 + $0xb8] sm:$0x7f]
        %v1536 = vld [vmem:[%s1511 + $0xc0] sm:$0xff]
        %v1537 = vld [vmem:[%s1511 + $0xc8] sm:$0x7f]
        %v1538 = vld [vmem:[%s1511 + $0xd0] sm:$0xff]
        %v1539 = vld [vmem:[%s1511 + $0xd8] sm:$0x7f]
        %v1540 = vld [vmem:[%s1511 + $0xe0] sm:$0xff]
        %v1541 = vld [vmem:[%s1511 + $0xe8] sm:$0x7f]
        %1572 = vrot.lane.b32.xlu0 %v1512, 24
        %v1573 = vpop.permute.xlu0 %1572
        %1574 = vrot.lane.b32.xlu0 %v1513, 24
        %v1575 = vpop.permute.xlu0 %1574
        %1576 = vrot.lane.b32.xlu0 %v1514, 24
        %v1577 = vpop.permute.xlu0 %1576
        %1578 = vrot.lane.b32.xlu0 %v1515, 24
        %v1579 = vpop.permute.xlu0 %1578
        %1580 = vrot.lane.b32.xlu0 %v1516, 24
        %v1581 = vpop.permute.xlu0 %1580
        %1582 = vrot.lane.b32.xlu0 %v1517, 24
        %v1583 = vpop.permute.xlu0 %1582
        %1584 = vrot.lane.b32.xlu0 %v1518, 24
        %v1585 = vpop.permute.xlu0 %1584
        %1586 = vrot.lane.b32.xlu0 %v1519, 24
        %v1587 = vpop.permute.xlu0 %1586
        %1588 = vrot.lane.b32.xlu0 %v1520, 24
        %v1589 = vpop.permute.xlu0 %1588
        %1590 = vrot.lane.b32.xlu0 %v1521, 24
        %v1591 = vpop.permute.xlu0 %1590
        %1592 = vrot.lane.b32.xlu0 %v1522, 24
        %v1593 = vpop.permute.xlu0 %1592
        %1594 = vrot.lane.b32.xlu0 %v1523, 24
        %v1595 = vpop.permute.xlu0 %1594
        %1596 = vrot.lane.b32.xlu0 %v1524, 24
        %v1597 = vpop.permute.xlu0 %1596
        %1598 = vrot.lane.b32.xlu0 %v1525, 24
        %v1599 = vpop.permute.xlu0 %1598
        %1600 = vrot.lane.b32.xlu0 %v1526, 24
        %v1601 = vpop.permute.xlu0 %1600
        %1602 = vrot.lane.b32.xlu0 %v1527, 24
        %v1603 = vpop.permute.xlu0 %1602
        %1604 = vrot.lane.b32.xlu0 %v1528, 24
        %v1605 = vpop.permute.xlu0 %1604
        %1606 = vrot.lane.b32.xlu0 %v1529, 24
        %v1607 = vpop.permute.xlu0 %1606
        %1608 = vrot.lane.b32.xlu0 %v1530, 24
        %v1609 = vpop.permute.xlu0 %1608
        %1610 = vrot.lane.b32.xlu0 %v1531, 24
        %v1611 = vpop.permute.xlu0 %1610
        %1612 = vrot.lane.b32.xlu0 %v1532, 24
        %v1613 = vpop.permute.xlu0 %1612
        %1614 = vrot.lane.b32.xlu0 %v1533, 24
        %v1615 = vpop.permute.xlu0 %1614
        %1616 = vrot.lane.b32.xlu0 %v1534, 24
        %v1617 = vpop.permute.xlu0 %1616
        %1618 = vrot.lane.b32.xlu0 %v1535, 24
        %v1619 = vpop.permute.xlu0 %1618
        %1620 = vrot.lane.b32.xlu0 %v1536, 24
        %v1621 = vpop.permute.xlu0 %1620
        %1622 = vrot.lane.b32.xlu0 %v1537, 24
        %v1623 = vpop.permute.xlu0 %1622
        %1624 = vrot.lane.b32.xlu0 %v1538, 24
        %v1625 = vpop.permute.xlu0 %1624
        %1626 = vrot.lane.b32.xlu0 %v1539, 24
        %v1627 = vpop.permute.xlu0 %1626
        %1628 = vrot.lane.b32.xlu0 %v1540, 24
        %v1629 = vpop.permute.xlu0 %1628
        %1630 = vrot.lane.b32.xlu0 %v1541, 24
        %v1631 = vpop.permute.xlu0 %1630
        %vm1662 = vcmask 228544
        %1663 = vst.msk [vmem:[#allocation2 + $0x1] sm:$0xff] %vm1662, %v1573
        %vm1664 = vcmask 227520
        %1665 = vst.msk [vmem:[#allocation2 + $0x9] sm:$0x7f] %vm1664, %v1575
        %1666 = vst.msk [vmem:[#allocation2 + $0x11] sm:$0xff] %vm1662, %v1577
        %1667 = vst.msk [vmem:[#allocation2 + $0x19] sm:$0x7f] %vm1664, %v1579
        %1668 = vst.msk [vmem:[#allocation2 + $0x21] sm:$0xff] %vm1662, %v1581
        %1669 = vst.msk [vmem:[#allocation2 + $0x29] sm:$0x7f] %vm1664, %v1583
        %1670 = vst.msk [vmem:[#allocation2 + $0x31] sm:$0xff] %vm1662, %v1585
        %1671 = vst.msk [vmem:[#allocation2 + $0x39] sm:$0x7f] %vm1664, %v1587
        %1672 = vst.msk [vmem:[#allocation2 + $0x41] sm:$0xff] %vm1662, %v1589
        %1673 = vst.msk [vmem:[#allocation2 + $0x49] sm:$0x7f] %vm1664, %v1591
        %1674 = vst.msk [vmem:[#allocation2 + $0x51] sm:$0xff] %vm1662, %v1593
        %1675 = vst.msk [vmem:[#allocation2 + $0x59] sm:$0x7f] %vm1664, %v1595
        %1676 = vst.msk [vmem:[#allocation2 + $0x61] sm:$0xff] %vm1662, %v1597
        %1677 = vst.msk [vmem:[#allocation2 + $0x69] sm:$0x7f] %vm1664, %v1599
        %1678 = vst.msk [vmem:[#allocation2 + $0x71] sm:$0xff] %vm1662, %v1601
        %1679 = vst.msk [vmem:[#allocation2 + $0x79] sm:$0x7f] %vm1664, %v1603
        %1680 = vst.msk [vmem:[#allocation2 + $0x81] sm:$0xff] %vm1662, %v1605
        %1681 = vst.msk [vmem:[#allocation2 + $0x89] sm:$0x7f] %vm1664, %v1607
        %1682 = vst.msk [vmem:[#allocation2 + $0x91] sm:$0xff] %vm1662, %v1609
        %1683 = vst.msk [vmem:[#allocation2 + $0x99] sm:$0x7f] %vm1664, %v1611
        %1684 = vst.msk [vmem:[#allocation2 + $0xa1] sm:$0xff] %vm1662, %v1613
        %1685 = vst.msk [vmem:[#allocation2 + $0xa9] sm:$0x7f] %vm1664, %v1615
        %1686 = vst.msk [vmem:[#allocation2 + $0xb1] sm:$0xff] %vm1662, %v1617
        %1687 = vst.msk [vmem:[#allocation2 + $0xb9] sm:$0x7f] %vm1664, %v1619
        %1688 = vst.msk [vmem:[#allocation2 + $0xc1] sm:$0xff] %vm1662, %v1621
        %1689 = vst.msk [vmem:[#allocation2 + $0xc9] sm:$0x7f] %vm1664, %v1623
        %1690 = vst.msk [vmem:[#allocation2 + $0xd1] sm:$0xff] %vm1662, %v1625
        %1691 = vst.msk [vmem:[#allocation2 + $0xd9] sm:$0x7f] %vm1664, %v1627
        %1692 = vst.msk [vmem:[#allocation2 + $0xe1] sm:$0xff] %vm1662, %v1629
        %1693 = vst.msk [vmem:[#allocation2 + $0xe9] sm:$0x7f] %vm1664, %v1631
        %v1694 = vld [vmem:[%s375] sm:$0xff]
        %v1695 = vld [vmem:[%s375 + $0x8] sm:$0x7f]
        %v1696 = vsel %vm466, 0.0, %v1694
        %v1697 = vsel %vm466, 0.0, %v1695
        %1700 = vrot.lane.b32.xlu0 %v1696, 24
        %v1701 = vpop.permute.xlu0 %1700
        %1702 = vrot.lane.b32.xlu0 %v1697, 24
        %v1703 = vpop.permute.xlu0 %1702
        %s1706 = scalar_lea.vmem [#allocation2], 240
        %1707 = vst.msk [vmem:[%s1706 + $0x1] sm:$0xff] %vm1662, %v1701
        %1708 = vst.msk [vmem:[%s1706 + $0x9] sm:$0x7f] %vm1664, %v1703
        %v1709 = vld [vmem:[%s1511] sm:$0xff]
        %v1710 = vld [vmem:[%s1511 + $0x8] sm:$0xff]
        %v1711 = vld [vmem:[%s1511 + $0x10] sm:$0xff]
        %v1712 = vld [vmem:[%s1511 + $0x18] sm:$0xff]
        %v1713 = vld [vmem:[%s1511 + $0x20] sm:$0xff]
        %v1714 = vld [vmem:[%s1511 + $0x28] sm:$0xff]
        %v1715 = vld [vmem:[%s1511 + $0x30] sm:$0xff]
        %v1716 = vld [vmem:[%s1511 + $0x38] sm:$0xff]
        %v1717 = vld [vmem:[%s1511 + $0x40] sm:$0xff]
        %v1718 = vld [vmem:[%s1511 + $0x48] sm:$0xff]
        %v1719 = vld [vmem:[%s1511 + $0x50] sm:$0xff]
        %v1720 = vld [vmem:[%s1511 + $0x58] sm:$0xff]
        %v1721 = vld [vmem:[%s1511 + $0x60] sm:$0xff]
        %v1722 = vld [vmem:[%s1511 + $0x68] sm:$0xff]
        %v1723 = vld [vmem:[%s1511 + $0x70] sm:$0xff]
        %v1724 = vld [vmem:[%s1511 + $0x78] sm:$0xff]
        %v1725 = vld [vmem:[%s1511 + $0x80] sm:$0xff]
        %v1726 = vld [vmem:[%s1511 + $0x88] sm:$0xff]
        %v1727 = vld [vmem:[%s1511 + $0x90] sm:$0xff]
        %v1728 = vld [vmem:[%s1511 + $0x98] sm:$0xff]
        %v1729 = vld [vmem:[%s1511 + $0xa0] sm:$0xff]
        %v1730 = vld [vmem:[%s1511 + $0xa8] sm:$0xff]
        %v1731 = vld [vmem:[%s1511 + $0xb0] sm:$0xff]
        %v1732 = vld [vmem:[%s1511 + $0xb8] sm:$0xff]
        %v1733 = vld [vmem:[%s1511 + $0xc0] sm:$0xff]
        %v1734 = vld [vmem:[%s1511 + $0xc8] sm:$0xff]
        %v1735 = vld [vmem:[%s1511 + $0xd0] sm:$0xff]
        %v1736 = vld [vmem:[%s1511 + $0xd8] sm:$0xff]
        %v1737 = vld [vmem:[%s1511 + $0xe0] sm:$0xff]
        %v1738 = vld [vmem:[%s1511 + $0xe8] sm:$0xff]
        %1769 = vrot.lane.b32.xlu0 %v1709, 28
        %v1770 = vpop.permute.xlu0 %1769
        %1771 = vrot.lane.b32.xlu0 %v1710, 28
        %v1772 = vpop.permute.xlu0 %1771
        %1773 = vrot.lane.b32.xlu0 %v1711, 28
        %v1774 = vpop.permute.xlu0 %1773
        %1775 = vrot.lane.b32.xlu0 %v1712, 28
        %v1776 = vpop.permute.xlu0 %1775
        %1777 = vrot.lane.b32.xlu0 %v1713, 28
        %v1778 = vpop.permute.xlu0 %1777
        %1779 = vrot.lane.b32.xlu0 %v1714, 28
        %v1780 = vpop.permute.xlu0 %1779
        %1781 = vrot.lane.b32.xlu0 %v1715, 28
        %v1782 = vpop.permute.xlu0 %1781
        %1783 = vrot.lane.b32.xlu0 %v1716, 28
        %v1784 = vpop.permute.xlu0 %1783
        %1785 = vrot.lane.b32.xlu0 %v1717, 28
        %v1786 = vpop.permute.xlu0 %1785
        %1787 = vrot.lane.b32.xlu0 %v1718, 28
        %v1788 = vpop.permute.xlu0 %1787
        %1789 = vrot.lane.b32.xlu0 %v1719, 28
        %v1790 = vpop.permute.xlu0 %1789
        %1791 = vrot.lane.b32.xlu0 %v1720, 28
        %v1792 = vpop.permute.xlu0 %1791
        %1793 = vrot.lane.b32.xlu0 %v1721, 28
        %v1794 = vpop.permute.xlu0 %1793
        %1795 = vrot.lane.b32.xlu0 %v1722, 28
        %v1796 = vpop.permute.xlu0 %1795
        %1797 = vrot.lane.b32.xlu0 %v1723, 28
        %v1798 = vpop.permute.xlu0 %1797
        %1799 = vrot.lane.b32.xlu0 %v1724, 28
        %v1800 = vpop.permute.xlu0 %1799
        %1801 = vrot.lane.b32.xlu0 %v1725, 28
        %v1802 = vpop.permute.xlu0 %1801
        %1803 = vrot.lane.b32.xlu0 %v1726, 28
        %v1804 = vpop.permute.xlu0 %1803
        %1805 = vrot.lane.b32.xlu0 %v1727, 28
        %v1806 = vpop.permute.xlu0 %1805
        %1807 = vrot.lane.b32.xlu0 %v1728, 28
        %v1808 = vpop.permute.xlu0 %1807
        %1809 = vrot.lane.b32.xlu0 %v1729, 28
        %v1810 = vpop.permute.xlu0 %1809
        %1811 = vrot.lane.b32.xlu0 %v1730, 28
        %v1812 = vpop.permute.xlu0 %1811
        %1813 = vrot.lane.b32.xlu0 %v1731, 28
        %v1814 = vpop.permute.xlu0 %1813
        %1815 = vrot.lane.b32.xlu0 %v1732, 28
        %v1816 = vpop.permute.xlu0 %1815
        %1817 = vrot.lane.b32.xlu0 %v1733, 28
        %v1818 = vpop.permute.xlu0 %1817
        %1819 = vrot.lane.b32.xlu0 %v1734, 28
        %v1820 = vpop.permute.xlu0 %1819
        %1821 = vrot.lane.b32.xlu0 %v1735, 28
        %v1822 = vpop.permute.xlu0 %1821
        %1823 = vrot.lane.b32.xlu0 %v1736, 28
        %v1824 = vpop.permute.xlu0 %1823
        %1825 = vrot.lane.b32.xlu0 %v1737, 28
        %v1826 = vpop.permute.xlu0 %1825
        %1827 = vrot.lane.b32.xlu0 %v1738, 28
        %v1828 = vpop.permute.xlu0 %1827
        %vm1859 = vcmask 261344
        %1860 = vst.msk [vmem:[#allocation2] sm:$0xff] %vm1859, %v1770
        %1861 = vst.msk [vmem:[#allocation2 + $0x8] sm:$0xff] %vm1859, %v1772
        %1862 = vst.msk [vmem:[#allocation2 + $0x10] sm:$0xff] %vm1859, %v1774
        %1863 = vst.msk [vmem:[#allocation2 + $0x18] sm:$0xff] %vm1859, %v1776
        %1864 = vst.msk [vmem:[#allocation2 + $0x20] sm:$0xff] %vm1859, %v1778
        %1865 = vst.msk [vmem:[#allocation2 + $0x28] sm:$0xff] %vm1859, %v1780
        %1866 = vst.msk [vmem:[#allocation2 + $0x30] sm:$0xff] %vm1859, %v1782
        %1867 = vst.msk [vmem:[#allocation2 + $0x38] sm:$0xff] %vm1859, %v1784
        %1868 = vst.msk [vmem:[#allocation2 + $0x40] sm:$0xff] %vm1859, %v1786
        %1869 = vst.msk [vmem:[#allocation2 + $0x48] sm:$0xff] %vm1859, %v1788
        %1870 = vst.msk [vmem:[#allocation2 + $0x50] sm:$0xff] %vm1859, %v1790
        %1871 = vst.msk [vmem:[#allocation2 + $0x58] sm:$0xff] %vm1859, %v1792
        %1872 = vst.msk [vmem:[#allocation2 + $0x60] sm:$0xff] %vm1859, %v1794
        %1873 = vst.msk [vmem:[#allocation2 + $0x68] sm:$0xff] %vm1859, %v1796
        %1874 = vst.msk [vmem:[#allocation2 + $0x70] sm:$0xff] %vm1859, %v1798
        %1875 = vst.msk [vmem:[#allocation2 + $0x78] sm:$0xff] %vm1859, %v1800
        %1876 = vst.msk [vmem:[#allocation2 + $0x80] sm:$0xff] %vm1859, %v1802
        %1877 = vst.msk [vmem:[#allocation2 + $0x88] sm:$0xff] %vm1859, %v1804
        %1878 = vst.msk [vmem:[#allocation2 + $0x90] sm:$0xff] %vm1859, %v1806
        %1879 = vst.msk [vmem:[#allocation2 + $0x98] sm:$0xff] %vm1859, %v1808
        %1880 = vst.msk [vmem:[#allocation2 + $0xa0] sm:$0xff] %vm1859, %v1810
        %1881 = vst.msk [vmem:[#allocation2 + $0xa8] sm:$0xff] %vm1859, %v1812
        %1882 = vst.msk [vmem:[#allocation2 + $0xb0] sm:$0xff] %vm1859, %v1814
        %1883 = vst.msk [vmem:[#allocation2 + $0xb8] sm:$0xff] %vm1859, %v1816
        %1884 = vst.msk [vmem:[#allocation2 + $0xc0] sm:$0xff] %vm1859, %v1818
        %1885 = vst.msk [vmem:[#allocation2 + $0xc8] sm:$0xff] %vm1859, %v1820
        %1886 = vst.msk [vmem:[#allocation2 + $0xd0] sm:$0xff] %vm1859, %v1822
        %1887 = vst.msk [vmem:[#allocation2 + $0xd8] sm:$0xff] %vm1859, %v1824
        %1888 = vst.msk [vmem:[#allocation2 + $0xe0] sm:$0xff] %vm1859, %v1826
        %1889 = vst.msk [vmem:[#allocation2 + $0xe8] sm:$0xff] %vm1859, %v1828
        %v1890 = vld [vmem:[%s375] sm:$0xff]
        %v1891 = vld [vmem:[%s375 + $0x8] sm:$0xff]
        %v1892 = vsel %vm466, 0.0, %v1890
        %v1893 = vsel %vm466, 0.0, %v1891
        %1896 = vrot.lane.b32.xlu0 %v1892, 28
        %v1897 = vpop.permute.xlu0 %1896
        %1898 = vrot.lane.b32.xlu0 %v1893, 28
        %v1899 = vpop.permute.xlu0 %1898
        %1902 = vst.msk [vmem:[%s1706] sm:$0xff] %vm1859, %v1897
        %1903 = vst.msk [vmem:[%s1706 + $0x8] sm:$0xff] %vm1859, %v1899
        %vm1904 = vcmask 286976
        %1905 = vst.msk [vmem:[#allocation2 + $0xf] sm:$0x1] %vm1904, 0.0
        %1906 = vst.msk [vmem:[#allocation2 + $0x1f] sm:$0x1] %vm1904, 0.0
        %1907 = vst.msk [vmem:[#allocation2 + $0x2f] sm:$0x1] %vm1904, 0.0
        %1908 = vst.msk [vmem:[#allocation2 + $0x3f] sm:$0x1] %vm1904, 0.0
        %1909 = vst.msk [vmem:[#allocation2 + $0x4f] sm:$0x1] %vm1904, 0.0
        %1910 = vst.msk [vmem:[#allocation2 + $0x5f] sm:$0x1] %vm1904, 0.0
        %1911 = vst.msk [vmem:[#allocation2 + $0x6f] sm:$0x1] %vm1904, 0.0
        %1912 = vst.msk [vmem:[#allocation2 + $0x7f] sm:$0x1] %vm1904, 0.0
        %1913 = vst.msk [vmem:[#allocation2 + $0x8f] sm:$0x1] %vm1904, 0.0
        %1914 = vst.msk [vmem:[#allocation2 + $0x9f] sm:$0x1] %vm1904, 0.0
        %1915 = vst.msk [vmem:[#allocation2 + $0xaf] sm:$0x1] %vm1904, 0.0
        %1916 = vst.msk [vmem:[#allocation2 + $0xbf] sm:$0x1] %vm1904, 0.0
        %1917 = vst.msk [vmem:[#allocation2 + $0xcf] sm:$0x1] %vm1904, 0.0
        %1918 = vst.msk [vmem:[#allocation2 + $0xdf] sm:$0x1] %vm1904, 0.0
        %1919 = vst.msk [vmem:[#allocation2 + $0xef] sm:$0x1] %vm1904, 0.0
        %1920 = vst.msk [vmem:[#allocation2 + $0xff] sm:$0x1] %vm1904, 0.0
        %v1921 = vld [vmem:[%s1511 + $0x1] sm:$0xff]
        %v1922 = vld [vmem:[%s1511 + $0x9] sm:$0x7f]
        %v1923 = vld [vmem:[%s1511 + $0x11] sm:$0xff]
        %v1924 = vld [vmem:[%s1511 + $0x19] sm:$0x7f]
        %v1925 = vld [vmem:[%s1511 + $0x21] sm:$0xff]
        %v1926 = vld [vmem:[%s1511 + $0x29] sm:$0x7f]
        %v1927 = vld [vmem:[%s1511 + $0x31] sm:$0xff]
        %v1928 = vld [vmem:[%s1511 + $0x39] sm:$0x7f]
        %v1929 = vld [vmem:[%s1511 + $0x41] sm:$0xff]
        %v1930 = vld [vmem:[%s1511 + $0x49] sm:$0x7f]
        %v1931 = vld [vmem:[%s1511 + $0x51] sm:$0xff]
        %v1932 = vld [vmem:[%s1511 + $0x59] sm:$0x7f]
        %v1933 = vld [vmem:[%s1511 + $0x61] sm:$0xff]
        %v1934 = vld [vmem:[%s1511 + $0x69] sm:$0x7f]
        %v1935 = vld [vmem:[%s1511 + $0x71] sm:$0xff]
        %v1936 = vld [vmem:[%s1511 + $0x79] sm:$0x7f]
        %v1937 = vld [vmem:[%s1511 + $0x81] sm:$0xff]
        %v1938 = vld [vmem:[%s1511 + $0x89] sm:$0x7f]
        %v1939 = vld [vmem:[%s1511 + $0x91] sm:$0xff]
        %v1940 = vld [vmem:[%s1511 + $0x99] sm:$0x7f]
        %v1941 = vld [vmem:[%s1511 + $0xa1] sm:$0xff]
        %v1942 = vld [vmem:[%s1511 + $0xa9] sm:$0x7f]
        %v1943 = vld [vmem:[%s1511 + $0xb1] sm:$0xff]
        %v1944 = vld [vmem:[%s1511 + $0xb9] sm:$0x7f]
        %v1945 = vld [vmem:[%s1511 + $0xc1] sm:$0xff]
        %v1946 = vld [vmem:[%s1511 + $0xc9] sm:$0x7f]
        %v1947 = vld [vmem:[%s1511 + $0xd1] sm:$0xff]
        %v1948 = vld [vmem:[%s1511 + $0xd9] sm:$0x7f]
        %v1949 = vld [vmem:[%s1511 + $0xe1] sm:$0xff]
        %v1950 = vld [vmem:[%s1511 + $0xe9] sm:$0x7f]
        %1981 = vrot.lane.b32.xlu0 %v1921, 32
        %v1982 = vpop.permute.xlu0 %1981
        %1983 = vrot.lane.b32.xlu0 %v1922, 32
        %v1984 = vpop.permute.xlu0 %1983
        %1985 = vrot.lane.b32.xlu0 %v1923, 32
        %v1986 = vpop.permute.xlu0 %1985
        %1987 = vrot.lane.b32.xlu0 %v1924, 32
        %v1988 = vpop.permute.xlu0 %1987
        %1989 = vrot.lane.b32.xlu0 %v1925, 32
        %v1990 = vpop.permute.xlu0 %1989
        %1991 = vrot.lane.b32.xlu0 %v1926, 32
        %v1992 = vpop.permute.xlu0 %1991
        %1993 = vrot.lane.b32.xlu0 %v1927, 32
        %v1994 = vpop.permute.xlu0 %1993
        %1995 = vrot.lane.b32.xlu0 %v1928, 32
        %v1996 = vpop.permute.xlu0 %1995
        %1997 = vrot.lane.b32.xlu0 %v1929, 32
        %v1998 = vpop.permute.xlu0 %1997
        %1999 = vrot.lane.b32.xlu0 %v1930, 32
        %v2000 = vpop.permute.xlu0 %1999
        %2001 = vrot.lane.b32.xlu0 %v1931, 32
        %v2002 = vpop.permute.xlu0 %2001
        %2003 = vrot.lane.b32.xlu0 %v1932, 32
        %v2004 = vpop.permute.xlu0 %2003
        %2005 = vrot.lane.b32.xlu0 %v1933, 32
        %v2006 = vpop.permute.xlu0 %2005
        %2007 = vrot.lane.b32.xlu0 %v1934, 32
        %v2008 = vpop.permute.xlu0 %2007
        %2009 = vrot.lane.b32.xlu0 %v1935, 32
        %v2010 = vpop.permute.xlu0 %2009
        %2011 = vrot.lane.b32.xlu0 %v1936, 32
        %v2012 = vpop.permute.xlu0 %2011
        %2013 = vrot.lane.b32.xlu0 %v1937, 32
        %v2014 = vpop.permute.xlu0 %2013
        %2015 = vrot.lane.b32.xlu0 %v1938, 32
        %v2016 = vpop.permute.xlu0 %2015
        %2017 = vrot.lane.b32.xlu0 %v1939, 32
        %v2018 = vpop.permute.xlu0 %2017
        %2019 = vrot.lane.b32.xlu0 %v1940, 32
        %v2020 = vpop.permute.xlu0 %2019
        %2021 = vrot.lane.b32.xlu0 %v1941, 32
        %v2022 = vpop.permute.xlu0 %2021
        %2023 = vrot.lane.b32.xlu0 %v1942, 32
        %v2024 = vpop.permute.xlu0 %2023
        %2025 = vrot.lane.b32.xlu0 %v1943, 32
        %v2026 = vpop.permute.xlu0 %2025
        %2027 = vrot.lane.b32.xlu0 %v1944, 32
        %v2028 = vpop.permute.xlu0 %2027
        %2029 = vrot.lane.b32.xlu0 %v1945, 32
        %v2030 = vpop.permute.xlu0 %2029
        %2031 = vrot.lane.b32.xlu0 %v1946, 32
        %v2032 = vpop.permute.xlu0 %2031
        %2033 = vrot.lane.b32.xlu0 %v1947, 32
        %v2034 = vpop.permute.xlu0 %2033
        %2035 = vrot.lane.b32.xlu0 %v1948, 32
        %v2036 = vpop.permute.xlu0 %2035
        %2037 = vrot.lane.b32.xlu0 %v1949, 32
        %v2038 = vpop.permute.xlu0 %2037
        %2039 = vrot.lane.b32.xlu0 %v1950, 32
        %v2040 = vpop.permute.xlu0 %2039
        %vm2071 = vcmask 294144
        %2072 = vst.msk [vmem:[#allocation2] sm:$0xff] %vm2071, %v1982
        %vm2073 = vcmask 293120
        %2074 = vst.msk [vmem:[#allocation2 + $0x8] sm:$0x7f] %vm2073, %v1984
        %2075 = vst.msk [vmem:[#allocation2 + $0x10] sm:$0xff] %vm2071, %v1986
        %2076 = vst.msk [vmem:[#allocation2 + $0x18] sm:$0x7f] %vm2073, %v1988
        %2077 = vst.msk [vmem:[#allocation2 + $0x20] sm:$0xff] %vm2071, %v1990
        %2078 = vst.msk [vmem:[#allocation2 + $0x28] sm:$0x7f] %vm2073, %v1992
        %2079 = vst.msk [vmem:[#allocation2 + $0x30] sm:$0xff] %vm2071, %v1994
        %2080 = vst.msk [vmem:[#allocation2 + $0x38] sm:$0x7f] %vm2073, %v1996
        %2081 = vst.msk [vmem:[#allocation2 + $0x40] sm:$0xff] %vm2071, %v1998
        %2082 = vst.msk [vmem:[#allocation2 + $0x48] sm:$0x7f] %vm2073, %v2000
        %2083 = vst.msk [vmem:[#allocation2 + $0x50] sm:$0xff] %vm2071, %v2002
        %2084 = vst.msk [vmem:[#allocation2 + $0x58] sm:$0x7f] %vm2073, %v2004
        %2085 = vst.msk [vmem:[#allocation2 + $0x60] sm:$0xff] %vm2071, %v2006
        %2086 = vst.msk [vmem:[#allocation2 + $0x68] sm:$0x7f] %vm2073, %v2008
        %2087 = vst.msk [vmem:[#allocation2 + $0x70] sm:$0xff] %vm2071, %v2010
        %2088 = vst.msk [vmem:[#allocation2 + $0x78] sm:$0x7f] %vm2073, %v2012
        %2089 = vst.msk [vmem:[#allocation2 + $0x80] sm:$0xff] %vm2071, %v2014
        %2090 = vst.msk [vmem:[#allocation2 + $0x88] sm:$0x7f] %vm2073, %v2016
        %2091 = vst.msk [vmem:[#allocation2 + $0x90] sm:$0xff] %vm2071, %v2018
        %2092 = vst.msk [vmem:[#allocation2 + $0x98] sm:$0x7f] %vm2073, %v2020
        %2093 = vst.msk [vmem:[#allocation2 + $0xa0] sm:$0xff] %vm2071, %v2022
        %2094 = vst.msk [vmem:[#allocation2 + $0xa8] sm:$0x7f] %vm2073, %v2024
        %2095 = vst.msk [vmem:[#allocation2 + $0xb0] sm:$0xff] %vm2071, %v2026
        %2096 = vst.msk [vmem:[#allocation2 + $0xb8] sm:$0x7f] %vm2073, %v2028
        %2097 = vst.msk [vmem:[#allocation2 + $0xc0] sm:$0xff] %vm2071, %v2030
        %2098 = vst.msk [vmem:[#allocation2 + $0xc8] sm:$0x7f] %vm2073, %v2032
        %2099 = vst.msk [vmem:[#allocation2 + $0xd0] sm:$0xff] %vm2071, %v2034
        %2100 = vst.msk [vmem:[#allocation2 + $0xd8] sm:$0x7f] %vm2073, %v2036
        %2101 = vst.msk [vmem:[#allocation2 + $0xe0] sm:$0xff] %vm2071, %v2038
        %2102 = vst.msk [vmem:[#allocation2 + $0xe8] sm:$0x7f] %vm2073, %v2040
        %v2103 = vld [vmem:[%s375 + $0x1] sm:$0xff]
        %v2104 = vld [vmem:[%s375 + $0x9] sm:$0x7f]
        %v2105 = vsel %vm466, 0.0, %v2103
        %v2106 = vsel %vm466, 0.0, %v2104
        %2109 = vrot.lane.b32.xlu0 %v2105, 32
        %v2110 = vpop.permute.xlu0 %2109
        %2111 = vrot.lane.b32.xlu0 %v2106, 32
        %v2112 = vpop.permute.xlu0 %2111
        %2115 = vst.msk [vmem:[%s1706] sm:$0xff] %vm2071, %v2110
        %2116 = vst.msk [vmem:[%s1706 + $0x8] sm:$0x7f] %vm2073, %v2112
        %v2117 = vld [vmem:[#allocation2] sm:$0xff]
        %v2118 = vld [vmem:[#allocation2 + $0x8] sm:$0xff]
        %v2119 = vld [vmem:[#allocation2 + $0x10] sm:$0xff]
        %v2120 = vld [vmem:[#allocation2 + $0x18] sm:$0xff]
        %v2121 = vld [vmem:[#allocation2 + $0x20] sm:$0xff]
        %v2122 = vld [vmem:[#allocation2 + $0x28] sm:$0xff]
        %v2123 = vld [vmem:[#allocation2 + $0x30] sm:$0xff]
        %v2124 = vld [vmem:[#allocation2 + $0x38] sm:$0xff]
        %v2125 = vld [vmem:[#allocation2 + $0x40] sm:$0xff]
        %v2126 = vld [vmem:[#allocation2 + $0x48] sm:$0xff]
        %v2127 = vld [vmem:[#allocation2 + $0x50] sm:$0xff]
        %v2128 = vld [vmem:[#allocation2 + $0x58] sm:$0xff]
        %v2129 = vld [vmem:[#allocation2 + $0x60] sm:$0xff]
        %v2130 = vld [vmem:[#allocation2 + $0x68] sm:$0xff]
        %v2131 = vld [vmem:[#allocation2 + $0x70] sm:$0xff]
        %v2132 = vld [vmem:[#allocation2 + $0x78] sm:$0xff]
        %v2133 = vld [vmem:[#allocation2 + $0x80] sm:$0xff]
        %v2134 = vld [vmem:[#allocation2 + $0x88] sm:$0xff]
        %v2135 = vld [vmem:[#allocation2 + $0x90] sm:$0xff]
        %v2136 = vld [vmem:[#allocation2 + $0x98] sm:$0xff]
        %v2137 = vld [vmem:[#allocation2 + $0xa0] sm:$0xff]
        %v2138 = vld [vmem:[#allocation2 + $0xa8] sm:$0xff]
        %v2139 = vld [vmem:[#allocation2 + $0xb0] sm:$0xff]
        %v2140 = vld [vmem:[#allocation2 + $0xb8] sm:$0xff]
        %v2141 = vld [vmem:[#allocation2 + $0xc0] sm:$0xff]
        %v2142 = vld [vmem:[#allocation2 + $0xc8] sm:$0xff]
        %v2143 = vld [vmem:[#allocation2 + $0xd0] sm:$0xff]
        %v2144 = vld [vmem:[#allocation2 + $0xd8] sm:$0xff]
        %v2145 = vld [vmem:[#allocation2 + $0xe0] sm:$0xff]
        %v2146 = vld [vmem:[#allocation2 + $0xe8] sm:$0xff]
        %v2147 = vld [vmem:[#allocation2 + $0xf0] sm:$0xff]
        %v2148 = vld [vmem:[#allocation2 + $0xf8] sm:$0xff]
        %v2149 = vld [vmem:[%s3] sm:$0xff]
        %v2150 = vld [vmem:[%s3 + $0x8] sm:$0xff]
        %v2151 = vld [vmem:[%s3 + $0x10] sm:$0xff]
        %v2152 = vld [vmem:[%s3 + $0x18] sm:$0xff]
        %v2153 = vld [vmem:[%s3 + $0x20] sm:$0xf]
        %v2154 = vld [vmem:[%s4] sm:$0x1]
        %v2156 = vlaneseq
        %v2157 = vshrl.u32 %v2156, 7
        %v2158 = vsub.s32 0, %v2157
        %v2159 = vrot.slane %v2154, %v2158
        %vm2161 = vcmask 293888
        %v2163 = vsel %vm2161, %v2117, 0
        %v2166 = vsel %vm2161, %v2118, 0
        %v2169 = vsel %vm2161, %v2119, 0
        %v2172 = vsel %vm2161, %v2120, 0
        %v2175 = vsel %vm2161, %v2121, 0
        %v2178 = vsel %vm2161, %v2122, 0
        %v2181 = vsel %vm2161, %v2123, 0
        %v2184 = vsel %vm2161, %v2124, 0
        %v2187 = vsel %vm2161, %v2125, 0
        %v2190 = vsel %vm2161, %v2126, 0
        %v2193 = vsel %vm2161, %v2127, 0
        %v2196 = vsel %vm2161, %v2128, 0
        %v2199 = vsel %vm2161, %v2129, 0
        %v2202 = vsel %vm2161, %v2130, 0
        %v2205 = vsel %vm2161, %v2131, 0
        %v2208 = vsel %vm2161, %v2132, 0
        %v2211 = vsel %vm2161, %v2133, 0
        %v2214 = vsel %vm2161, %v2134, 0
        %v2217 = vsel %vm2161, %v2135, 0
        %v2220 = vsel %vm2161, %v2136, 0
        %v2223 = vsel %vm2161, %v2137, 0
        %v2226 = vsel %vm2161, %v2138, 0
        %v2229 = vsel %vm2161, %v2139, 0
        %v2232 = vsel %vm2161, %v2140, 0
        %v2235 = vsel %vm2161, %v2141, 0
        %v2238 = vsel %vm2161, %v2142, 0
        %v2241 = vsel %vm2161, %v2143, 0
        %v2244 = vsel %vm2161, %v2144, 0
        %v2247 = vsel %vm2161, %v2145, 0
        %v2250 = vsel %vm2161, %v2146, 0
        %v2253 = vsel %vm2161, %v2147, 0
        %v2256 = vsel %vm2161, %v2148, 0
        %vm2258 = vcmask 1043456
        %v2260 = vsel %vm2258, %v2153, 0
        %2262 = vmatprep.subr.mxu0 0.0
        %2263 = vmatpush1.msra.mxu0 %v2149
        %2264 = vmatprep.subr.mxu0 0.0
        %2265 = vmatpush1.msra.mxu0 %v2150
        %2266 = vmatprep.subr.mxu0 0.0
        %2267 = vmatpush1.msra.mxu0 %v2151
        %2268 = vmatprep.subr.mxu0 0.0
        %2269 = vmatpush1.msra.mxu0 %v2152
        %2270 = vmatprep.subr.mxu0 0.0
        %2271 = vmatpush1.msra.mxu0 %v2260
        %2272 = vmatprep.subr.mxu0 0.0
        %2273 = vmatpush1.msra.mxu0 0.0
        %2274 = vmatprep.subr.mxu0 0.0
        %2275 = vmatpush1.msra.mxu0 0.0
        %2276 = vmatprep.subr.mxu0 0.0
        %2277 = vmatpush1.msra.mxu0 0.0
        %2278 = vmatprep.subr.mxu0 0.0
        %2279 = vmatpush1.msra.mxu0 0.0
        %2280 = vmatprep.subr.mxu0 0.0
        %2281 = vmatpush1.msra.mxu0 0.0
        %2282 = vmatprep.subr.mxu0 0.0
        %2283 = vmatpush1.msra.mxu0 0.0
        %2284 = vmatprep.subr.mxu0 0.0
        %2285 = vmatpush1.msra.mxu0 0.0
        %2286 = vmatprep.subr.mxu0 0.0
        %2287 = vmatpush1.msra.mxu0 0.0
        %2288 = vmatprep.subr.mxu0 0.0
        %2289 = vmatpush1.msra.mxu0 0.0
        %2290 = vmatprep.subr.mxu0 0.0
        %2291 = vmatpush1.msra.mxu0 0.0
        %2292 = vmatprep.subr.mxu0 0.0
        %2293 = vmatpush1.msra.mxu0 0.0
        %2294 = vmatprep.subr.mxu0 0.0
        %2295 = vmatpush1.msra.mxu0 0.0
        %2296 = vmatprep.subr.mxu0 0.0
        %2297 = vmatpush1.msra.mxu0 0.0
        %2298 = vmatprep.subr.mxu0 0.0
        %2299 = vmatpush1.msra.mxu0 0.0
        %2300 = vmatprep.subr.mxu0 0.0
        %2301 = vmatpush1.msra.mxu0 0.0
        %2302 = vmatprep.subr.mxu0 0.0
        %2303 = vmatpush1.msra.mxu0 0.0
        %2304 = vmatprep.subr.mxu0 0.0
        %2305 = vmatpush1.msra.mxu0 0.0
        %2306 = vmatprep.subr.mxu0 0.0
        %2307 = vmatpush1.msra.mxu0 0.0
        %2308 = vmatprep.subr.mxu0 0.0
        %2309 = vmatpush1.msra.mxu0 0.0
        %2310 = vmatprep.subr.mxu0 0.0
        %2311 = vmatpush1.msra.mxu0 0.0
        %2312 = vmatprep.subr.mxu0 0.0
        %2313 = vmatpush1.msra.mxu0 0.0
        %2314 = vmatprep.subr.mxu0 0.0
        %2315 = vmatpush1.msra.mxu0 0.0
        %2316 = vmatprep.subr.mxu0 0.0
        %2317 = vmatpush1.msra.mxu0 0.0
        %2318 = vmatprep.subr.mxu0 0.0
        %2319 = vmatpush1.msra.mxu0 0.0
        %2320 = vmatprep.subr.mxu0 0.0
        %2321 = vmatpush1.msra.mxu0 0.0
        %2322 = vmatprep.subr.mxu0 0.0
        %2323 = vmatpush1.msra.mxu0 0.0
        %2324 = vmatprep.subr.mxu0 0.0
        %2325 = vmatpush1.msra.mxu0 0.0
        %2326 = vmatprep.mubr.f32.mxu0 0.0
        %2327 = vmatmul.mubr.f32.gmra.mrb[0].mxu0 %v2163
        %v2328 = vpop.f32.mrb[0].mxu0
        %v2329 = vadd.f32 %v2159, %v2328
        %v2330 = vpop.f32.mrb[0].mxu0
        %2331 = vmatprep.mubr.f32.mxu0 0.0
        %2332 = vmatmul.mubr.f32.gmra.mrb[0].mxu0 %v2166
        %v2333 = vpop.f32.mrb[0].mxu0
        %v2334 = vadd.f32 %v2159, %v2333
        %v2335 = vpop.f32.mrb[0].mxu0
        %2336 = vmatprep.mubr.f32.mxu0 0.0
        %2337 = vmatmul.mubr.f32.gmra.mrb[0].mxu0 %v2169
        %v2338 = vpop.f32.mrb[0].mxu0
        %v2339 = vadd.f32 %v2159, %v2338
        %v2340 = vpop.f32.mrb[0].mxu0
        %2341 = vmatprep.mubr.f32.mxu0 0.0
        %2342 = vmatmul.mubr.f32.gmra.mrb[0].mxu0 %v2172
        %v2343 = vpop.f32.mrb[0].mxu0
        %v2344 = vadd.f32 %v2159, %v2343
        %v2345 = vpop.f32.mrb[0].mxu0
        %2346 = vmatprep.mubr.f32.mxu0 0.0
        %2347 = vmatmul.mubr.f32.gmra.mrb[0].mxu0 %v2175
        %v2348 = vpop.f32.mrb[0].mxu0
        %v2349 = vadd.f32 %v2159, %v2348
        %v2350 = vpop.f32.mrb[0].mxu0
        %2351 = vmatprep.mubr.f32.mxu0 0.0
        %2352 = vmatmul.mubr.f32.gmra.mrb[0].mxu0 %v2178
        %v2353 = vpop.f32.mrb[0].mxu0
        %v2354 = vadd.f32 %v2159, %v2353
        %v2355 = vpop.f32.mrb[0].mxu0
        %2356 = vmatprep.mubr.f32.mxu0 0.0
        %2357 = vmatmul.mubr.f32.gmra.mrb[0].mxu0 %v2181
        %v2358 = vpop.f32.mrb[0].mxu0
        %v2359 = vadd.f32 %v2159, %v2358
        %v2360 = vpop.f32.mrb[0].mxu0
        %2361 = vmatprep.mubr.f32.mxu0 0.0
        %2362 = vmatmul.mubr.f32.gmra.mrb[0].mxu0 %v2184
        %v2363 = vpop.f32.mrb[0].mxu0
        %v2364 = vadd.f32 %v2159, %v2363
        %v2365 = vpop.f32.mrb[0].mxu0
        %2366 = vmatprep.mubr.f32.mxu0 0.0
        %2367 = vmatmul.mubr.f32.gmra.mrb[0].mxu0 %v2187
        %v2368 = vpop.f32.mrb[0].mxu0
        %v2369 = vadd.f32 %v2159, %v2368
        %v2370 = vpop.f32.mrb[0].mxu0
        %2371 = vmatprep.mubr.f32.mxu0 0.0
        %2372 = vmatmul.mubr.f32.gmra.mrb[0].mxu0 %v2190
        %v2373 = vpop.f32.mrb[0].mxu0
        %v2374 = vadd.f32 %v2159, %v2373
        %v2375 = vpop.f32.mrb[0].mxu0
        %2376 = vmatprep.mubr.f32.mxu0 0.0
        %2377 = vmatmul.mubr.f32.gmra.mrb[0].mxu0 %v2193
        %v2378 = vpop.f32.mrb[0].mxu0
        %v2379 = vadd.f32 %v2159, %v2378
        %v2380 = vpop.f32.mrb[0].mxu0
        %2381 = vmatprep.mubr.f32.mxu0 0.0
        %2382 = vmatmul.mubr.f32.gmra.mrb[0].mxu0 %v2196
        %v2383 = vpop.f32.mrb[0].mxu0
        %v2384 = vadd.f32 %v2159, %v2383
        %v2385 = vpop.f32.mrb[0].mxu0
        %2386 = vmatprep.mubr.f32.mxu0 0.0
        %2387 = vmatmul.mubr.f32.gmra.mrb[0].mxu0 %v2199
        %v2388 = vpop.f32.mrb[0].mxu0
        %v2389 = vadd.f32 %v2159, %v2388
        %v2390 = vpop.f32.mrb[0].mxu0
        %2391 = vmatprep.mubr.f32.mxu0 0.0
        %2392 = vmatmul.mubr.f32.gmra.mrb[0].mxu0 %v2202
        %v2393 = vpop.f32.mrb[0].mxu0
        %v2394 = vadd.f32 %v2159, %v2393
        %v2395 = vpop.f32.mrb[0].mxu0
        %2396 = vmatprep.mubr.f32.mxu0 0.0
        %2397 = vmatmul.mubr.f32.gmra.mrb[0].mxu0 %v2205
        %v2398 = vpop.f32.mrb[0].mxu0
        %v2399 = vadd.f32 %v2159, %v2398
        %v2400 = vpop.f32.mrb[0].mxu0
        %2401 = vmatprep.mubr.f32.mxu0 0.0
        %2402 = vmatmul.mubr.f32.gmra.mrb[0].mxu0 %v2208
        %v2403 = vpop.f32.mrb[0].mxu0
        %v2404 = vadd.f32 %v2159, %v2403
        %v2405 = vpop.f32.mrb[0].mxu0
        %2406 = vmatprep.mubr.f32.mxu0 0.0
        %2407 = vmatmul.mubr.f32.gmra.mrb[0].mxu0 %v2211
        %v2408 = vpop.f32.mrb[0].mxu0
        %v2409 = vadd.f32 %v2159, %v2408
        %v2410 = vpop.f32.mrb[0].mxu0
        %2411 = vmatprep.mubr.f32.mxu0 0.0
        %2412 = vmatmul.mubr.f32.gmra.mrb[0].mxu0 %v2214
        %v2413 = vpop.f32.mrb[0].mxu0
        %v2414 = vadd.f32 %v2159, %v2413
        %v2415 = vpop.f32.mrb[0].mxu0
        %2416 = vmatprep.mubr.f32.mxu0 0.0
        %2417 = vmatmul.mubr.f32.gmra.mrb[0].mxu0 %v2217
        %v2418 = vpop.f32.mrb[0].mxu0
        %v2419 = vadd.f32 %v2159, %v2418
        %v2420 = vpop.f32.mrb[0].mxu0
        %2421 = vmatprep.mubr.f32.mxu0 0.0
        %2422 = vmatmul.mubr.f32.gmra.mrb[0].mxu0 %v2220
        %v2423 = vpop.f32.mrb[0].mxu0
        %v2424 = vadd.f32 %v2159, %v2423
        %v2425 = vpop.f32.mrb[0].mxu0
        %2426 = vmatprep.mubr.f32.mxu0 0.0
        %2427 = vmatmul.mubr.f32.gmra.mrb[0].mxu0 %v2223
        %v2428 = vpop.f32.mrb[0].mxu0
        %v2429 = vadd.f32 %v2159, %v2428
        %v2430 = vpop.f32.mrb[0].mxu0
        %2431 = vmatprep.mubr.f32.mxu0 0.0
        %2432 = vmatmul.mubr.f32.gmra.mrb[0].mxu0 %v2226
        %v2433 = vpop.f32.mrb[0].mxu0
        %v2434 = vadd.f32 %v2159, %v2433
        %v2435 = vpop.f32.mrb[0].mxu0
        %2436 = vmatprep.mubr.f32.mxu0 0.0
        %2437 = vmatmul.mubr.f32.gmra.mrb[0].mxu0 %v2229
        %v2438 = vpop.f32.mrb[0].mxu0
        %v2439 = vadd.f32 %v2159, %v2438
        %v2440 = vpop.f32.mrb[0].mxu0
        %2441 = vmatprep.mubr.f32.mxu0 0.0
        %2442 = vmatmul.mubr.f32.gmra.mrb[0].mxu0 %v2232
        %v2443 = vpop.f32.mrb[0].mxu0
        %v2444 = vadd.f32 %v2159, %v2443
        %v2445 = vpop.f32.mrb[0].mxu0
        %2446 = vmatprep.mubr.f32.mxu0 0.0
        %2447 = vmatmul.mubr.f32.gmra.mrb[0].mxu0 %v2235
        %v2448 = vpop.f32.mrb[0].mxu0
        %v2449 = vadd.f32 %v2159, %v2448
        %v2450 = vpop.f32.mrb[0].mxu0
        %2451 = vmatprep.mubr.f32.mxu0 0.0
        %2452 = vmatmul.mubr.f32.gmra.mrb[0].mxu0 %v2238
        %v2453 = vpop.f32.mrb[0].mxu0
        %v2454 = vadd.f32 %v2159, %v2453
        %v2455 = vpop.f32.mrb[0].mxu0
        %2456 = vmatprep.mubr.f32.mxu0 0.0
        %2457 = vmatmul.mubr.f32.gmra.mrb[0].mxu0 %v2241
        %v2458 = vpop.f32.mrb[0].mxu0
        %v2459 = vadd.f32 %v2159, %v2458
        %v2460 = vpop.f32.mrb[0].mxu0
        %2461 = vmatprep.mubr.f32.mxu0 0.0
        %2462 = vmatmul.mubr.f32.gmra.mrb[0].mxu0 %v2244
        %v2463 = vpop.f32.mrb[0].mxu0
        %v2464 = vadd.f32 %v2159, %v2463
        %v2465 = vpop.f32.mrb[0].mxu0
        %2466 = vmatprep.mubr.f32.mxu0 0.0
        %2467 = vmatmul.mubr.f32.gmra.mrb[0].mxu0 %v2247
        %v2468 = vpop.f32.mrb[0].mxu0
        %v2469 = vadd.f32 %v2159, %v2468
        %v2470 = vpop.f32.mrb[0].mxu0
        %2471 = vmatprep.mubr.f32.mxu0 0.0
        %2472 = vmatmul.mubr.f32.gmra.mrb[0].mxu0 %v2250
        %v2473 = vpop.f32.mrb[0].mxu0
        %v2474 = vadd.f32 %v2159, %v2473
        %v2475 = vpop.f32.mrb[0].mxu0
        %2476 = vmatprep.mubr.f32.mxu0 0.0
        %2477 = vmatmul.mubr.f32.gmra.mrb[0].mxu0 %v2253
        %v2478 = vpop.f32.mrb[0].mxu0
        %v2479 = vadd.f32 %v2159, %v2478
        %v2480 = vpop.f32.mrb[0].mxu0
        %2481 = vmatprep.mubr.f32.mxu0 0.0
        %2482 = vmatmul.mubr.f32.gmra.mrb[0].mxu0 %v2256
        %v2483 = vpop.f32.mrb[0].mxu0
        %v2484 = vadd.f32 %v2159, %v2483
        %v2485 = vpop.f32.mrb[0].mxu0
        %2486 = vdwg.mxu0
        %vm2487 = vcmask 130048
        %2488 = vst.msk [vmem:[%s334] sm:$0xff] %vm2487, %v2329
        %2489 = vst.msk [vmem:[%s334 + $0x8] sm:$0xff] %vm2487, %v2334
        %2490 = vst.msk [vmem:[%s334 + $0x10] sm:$0xff] %vm2487, %v2339
        %2491 = vst.msk [vmem:[%s334 + $0x18] sm:$0xff] %vm2487, %v2344
        %2492 = vst.msk [vmem:[%s334 + $0x20] sm:$0xff] %vm2487, %v2349
        %2493 = vst.msk [vmem:[%s334 + $0x28] sm:$0xff] %vm2487, %v2354
        %2494 = vst.msk [vmem:[%s334 + $0x30] sm:$0xff] %vm2487, %v2359
        %2495 = vst.msk [vmem:[%s334 + $0x38] sm:$0xff] %vm2487, %v2364
        %2496 = vst.msk [vmem:[%s334 + $0x40] sm:$0xff] %vm2487, %v2369
        %2497 = vst.msk [vmem:[%s334 + $0x48] sm:$0xff] %vm2487, %v2374
        %2498 = vst.msk [vmem:[%s334 + $0x50] sm:$0xff] %vm2487, %v2379
        %2499 = vst.msk [vmem:[%s334 + $0x58] sm:$0xff] %vm2487, %v2384
        %2500 = vst.msk [vmem:[%s334 + $0x60] sm:$0xff] %vm2487, %v2389
        %2501 = vst.msk [vmem:[%s334 + $0x68] sm:$0xff] %vm2487, %v2394
        %2502 = vst.msk [vmem:[%s334 + $0x70] sm:$0xff] %vm2487, %v2399
        %2503 = vst.msk [vmem:[%s334 + $0x78] sm:$0xff] %vm2487, %v2404
        %2504 = vst.msk [vmem:[%s334 + $0x80] sm:$0xff] %vm2487, %v2409
        %2505 = vst.msk [vmem:[%s334 + $0x88] sm:$0xff] %vm2487, %v2414
        %2506 = vst.msk [vmem:[%s334 + $0x90] sm:$0xff] %vm2487, %v2419
        %2507 = vst.msk [vmem:[%s334 + $0x98] sm:$0xff] %vm2487, %v2424
        %2508 = vst.msk [vmem:[%s334 + $0xa0] sm:$0xff] %vm2487, %v2429
        %2509 = vst.msk [vmem:[%s334 + $0xa8] sm:$0xff] %vm2487, %v2434
        %2510 = vst.msk [vmem:[%s334 + $0xb0] sm:$0xff] %vm2487, %v2439
        %2511 = vst.msk [vmem:[%s334 + $0xb8] sm:$0xff] %vm2487, %v2444
        %2512 = vst.msk [vmem:[%s334 + $0xc0] sm:$0xff] %vm2487, %v2449
        %2513 = vst.msk [vmem:[%s334 + $0xc8] sm:$0xff] %vm2487, %v2454
        %2514 = vst.msk [vmem:[%s334 + $0xd0] sm:$0xff] %vm2487, %v2459
        %2515 = vst.msk [vmem:[%s334 + $0xd8] sm:$0xff] %vm2487, %v2464
        %2516 = vst.msk [vmem:[%s334 + $0xe0] sm:$0xff] %vm2487, %v2469
        %2517 = vst.msk [vmem:[%s334 + $0xe8] sm:$0xff] %vm2487, %v2474
        %2518 = vst.msk [vmem:[%s334 + $0xf0] sm:$0xff] %vm2487, %v2479
        %2519 = vst.msk [vmem:[%s334 + $0xf8] sm:$0xff] %vm2487, %v2484
        %s2520 = sand.u32 %s183, 1
        %s2521 = scalar_lea.sflag [#allocation4], %s2520
        %s2522 = sand.u32 %s183, 1
        %s2523 = smul.addr %s2522, 256
        %s2524 = scalar_lea.vmem [#allocation3], %s2523
        // Predicated region
        $region41: #{tpu_custom_call.1} parent=39 // pred_check
          %p2525 = pneg %p193
        $region42: #{tpu_custom_call.1} parent=39 // pred_check_branch
          %2527 = sbr.rel (%p2525) target = $region44
        $region43: #{tpu_custom_call.1} parent=39 // pred_region
          %s2528 = smul.u32 16, %s24
          %s2530 = ssub.s32 4096, 4096
          %2531 = vsyncadd %s2521, %s2530
          %s2532 = smul.addr %s2528, 2
          %s2533 = smul.addr %s23, 32
          %s2534 = sadd.s32 %s2532, %s2533
          %s2535 = smul.addr %s2534, 128
          %s2536 = scalar_lea.hbm %s5, %s2535
          %s2537 = sshll.u32 %s2524, 4
          %s2538 = int_to_ptr.vmem [resolvable:$true] %s2537
          %2543 = dma.vmem_to_hbm [thread:$0]  %s2538, 4096, %s2536, %s2521, 128, 128, 8
        $region44: #{tpu_custom_call.1} parent=39 // pred_fallthru
          _
      $region40: #{tpu_custom_call.1} parent=5 // pred_fallthru
        _
      %p2544 = scmp.le.s32.totalorder 2, %s14
      // Predicated region
      $region45: #{tpu_custom_call.1} parent=5 // pred_check
        %p2545 = pneg %p2544
      $region46: #{tpu_custom_call.1} parent=5 // pred_check_branch
        %2547 = sbr.rel (%p2545) target = $region48
      $region47: #{tpu_custom_call.1} parent=5 // pred_region
        %s2548 = ssub.s32 %s14, 2
        // Predicated region
        $region49: #{tpu_custom_call.1} parent=47 // pred_check
          %p2549 = pneg %p199
        $region50: #{tpu_custom_call.1} parent=47 // pred_check_branch
          %2551 = sbr.rel (%p2549) target = $region52
        $region51: #{tpu_custom_call.1} parent=47 // pred_region
          %s2552 = sand.u32 %s184, 1
          %s2553 = scalar_lea.sflag [#allocation4], %s2552
          %s2554 = sand.u32 %s184, 1
          %s2555 = smul.addr %s2554, 256
          %s2556 = scalar_lea.vmem [#allocation3], %s2555
          %2557 = dma.done %s2553, 4096
        $region52: #{tpu_custom_call.1} parent=47 // pred_fallthru
          _
      $region48: #{tpu_custom_call.1} parent=5 // pred_fallthru
        _
    $region6: #{tpu_custom_call.1} parent=1 // loop_footer
      %s18 = sadd.s32 1, %s14
    $region7: #{tpu_custom_call.1} parent=1 // loop_footer_branch
      %13 = sbr.rel target = $region3
    $region8: #{tpu_custom_call.1} parent=1 // loop_exit
      _
    %2558 = vsyncpa [#allocation4], 1
    %s2559 = scalar_lea.sflag [#allocation4], 1
    %2560 = vsyncpa %s2559, 1

</llo_original>
